<compile_context>
chip_gen: v6e
topology: v6e:2x2x1
jax: 0.10.0
libtpu: 0.0.40
codegen_flags: <defaults>
</compile_context>

<pallas_src>
import functools

import jax
import jax.numpy as jnp
from jax.experimental import pallas as pl
from jax.experimental.pallas import tpu as pltpu


def _round_up(x, m):
    return (x + m - 1) // m * m


def _cdiv(a, b):
    return -(-a // b)


def _leaky_relu(x, negative_slope=0.01):
    # max(x, a*x) == LeakyReLU(x) for 0 <= a <= 1 (mul+max = 2 VALU ops vs 3 for where/select).
    return jnp.maximum(x, negative_slope * x)


def _vmem_capacity_bytes():
    """Best-effort per-core VMEM capacity (v5e/v6e: 128 MiB, v7x: 64 MiB)."""
    try:
        info = pltpu.get_tpu_info()
        for attr in ("vmem_capacity_bytes", "vmem_bytes", "vmem_size_bytes"):
            v = getattr(info, attr, None)
            if v:
                return int(v)
    except Exception:
        pass
    return 64 << 20  # conservative default: v7x per-TensorCore VMEM


# ----------------------------- fused 3-layer MLP -----------------------------


def _fused_mlp_kernel(x_ref, w1_ref, b1_ref, w2_ref, b2_ref, w3_ref, b3_ref, o_ref):
    # rel_fc1 / rel_fc2 / rel_fc3 fused over one row tile.  MXU matmuls with f32
    # accumulation; bias-add + LeakyReLU epilogues in f32 on the VPU
    # (Dropout = identity in eval mode).  x is cast to the weight compute dtype
    # on the VPU so the wrapper never needs a separate cast pass over x.
    x = x_ref[...].astype(w1_ref.dtype)

    h1 = jnp.dot(x, w1_ref[...], preferred_element_type=jnp.float32) + b1_ref[...]
    h1 = _leaky_relu(h1).astype(w2_ref.dtype)

    h2 = jnp.dot(h1, w2_ref[...], preferred_element_type=jnp.float32) + b2_ref[...]
    h2 = _leaky_relu(h2).astype(w3_ref.dtype)

    o_ref[...] = (jnp.dot(h2, w3_ref[...], preferred_element_type=jnp.float32)
                  + b3_ref[...]).astype(o_ref.dtype)


# --------------------- weight-tiled fallback (per layer) ---------------------


def _tiled_linear_kernel(x_ref, w_ref, b_ref, o_ref, acc_ref, *, slope):
    @pl.when(pl.program_id(2) == 0)
    def _():
        acc_ref[...] = jnp.zeros_like(acc_ref)

    x = x_ref[...].astype(w_ref.dtype)
    acc_ref[...] += jnp.dot(x, w_ref[...], preferred_element_type=jnp.float32)

    @pl.when(pl.program_id(2) == pl.num_programs(2) - 1)
    def _():
        h = acc_ref[...] + b_ref[...]
        if slope is not None:
            h = _leaky_relu(h, slope)
        o_ref[...] = h.astype(o_ref.dtype)


def _pick_tile(dim):
    # dim is a multiple of 128 by construction.
    for t in (512, 256, 128):
        if dim % t == 0:
            return t
    return dim


def _tiled_linear(x_op, w, b, *, slope, out_dtype, tm, budget):
    """One Linear (+ optional LeakyReLU) with M/N/K-tiled weights streamed from HBM."""
    Mp, Kp = x_op.shape
    Np = w.shape[1]
    tk, tn = _pick_tile(Kp), _pick_tile(Np)
    grid = (Mp // tm, Np // tn, Kp // tk)

    xb = jnp.dtype(x_op.dtype).itemsize
    cb = jnp.dtype(w.dtype).itemsize
    ob = jnp.dtype(out_dtype).itemsize
    need = 2 * (tm * tk * xb + tk * tn * cb + tn * 4 + tm * tn * ob) + tm * tn * 4
    vmem_limit = int(min(budget, max(2 * need, 4 << 20)))

    return pl.pallas_call(
        functools.partial(_tiled_linear_kernel, slope=slope),
        out_shape=jax.ShapeDtypeStruct((Mp, Np), out_dtype),
        grid=grid,
        in_specs=[
            pl.BlockSpec((tm, tk), lambda i, j, k: (i, k)),
            pl.BlockSpec((tk, tn), lambda i, j, k: (k, j)),
            pl.BlockSpec((1, tn), lambda i, j, k: (0, j)),
        ],
        out_specs=pl.BlockSpec((tm, tn), lambda i, j, k: (i, j)),
        scratch_shapes=[pltpu.VMEM((tm, tn), jnp.float32)],
        compiler_params=pltpu.CompilerParams(
            dimension_semantics=("parallel", "parallel", "arbitrary"),
            vmem_limit_bytes=vmem_limit,
        ),
    )(x_op, w, b)


# --------------------------------- wrapper -----------------------------------


def relation_latent_encoder_forward(inputs, y, params, *, compute_dtype=jnp.bfloat16,
                                    tm=None, out_dtype=None, force_tiled=False):
    """Pallas implementation of RelationLatentEncoder.forward.

    inputs: (B, few, *rest) with prod(rest) == 2*embed_size
    y:      static python int (1 -> label column of ones, else zeros)
    params: dict with w1,b1,w2,b2,w3,b3 (weights stored as (in, out);
            w1 keeps the full 2*embed+1 input rows like the PyTorch module)
    """
    B, FEW = inputs.shape[0], inputs.shape[1]
    x2d = inputs.reshape(B * FEW, -1)               # inputs.view(B, few, -1), flattened rows
    M, K = x2d.shape                                # K = 2 * embed_size
    out_dtype = inputs.dtype if out_dtype is None else out_dtype

    w1, b1 = params["w1"], params["b1"]
    w2, b2 = params["w2"], params["b2"]
    w3, b3 = params["w3"], params["b3"]
    H1, H2, R = w1.shape[1], w2.shape[1], w3.shape[1]

    # Fold the constant 0/1 label column into the first-layer bias (exact).
    label_val = 1.0 if y == 1 else 0.0
    w1_main = w1[:K, :]
    b1_eff = b1.astype(jnp.float32) + label_val * w1[K:K + 1, :].astype(jnp.float32)

    cdt = compute_dtype
    cb = jnp.dtype(cdt).itemsize
    ob = jnp.dtype(out_dtype).itemsize
    xb = max(jnp.dtype(inputs.dtype).itemsize, cb)  # conservative for accounting

    # Lane-aligned padded feature dims.  Large hidden dims get 256 alignment
    # (fills v6e/v7x's 256x256 MXU passes; still 128-aligned so fine on v5e);
    # K and R stay 128-aligned to minimize input/output HBM traffic.
    Kp = _round_up(K, 128)
    H1p = _round_up(H1, 256 if H1 >= 256 else 128)
    H2p = _round_up(H2, 256 if H2 >= 256 else 128)
    Rp = _round_up(R, 128)

    # Generation-aware VMEM budget (~75% of physical per-core VMEM).
    vmem_cap = _vmem_capacity_bytes()
    budget = (vmem_cap * 3) // 4                    # ~48 MiB on v7x, ~96 MiB on v5e/v6e
    if tm is None:
        tm = 1024 if budget >= (80 << 20) else 512

    weight_bytes = (Kp * H1p + H1p * H2p + H2p * Rp) * cb
    bias_bytes = (H1p + H2p + Rp) * 4

    def fused_need(tm_, single_buffer_weights=True):
        io = 2 * tm_ * Kp * xb + 2 * tm_ * Rp * ob                    # double-buffered x/out tiles
        tmp = tm_ * (Kp + H1p + H2p) * cb + tm_ * (H1p + H2p) * 4     # in-kernel casts + f32 h1/h2
        wmult = 1 if single_buffer_weights else 2
        return wmult * weight_bytes + bias_bytes + io + tmp

    # Adaptive row tile: >= 2 tiles when possible (lets the "parallel" row axis
    # shard across v7x's two TensorCores) and minimal Mp - M padding.
    M8 = _round_up(max(M, 1), 8)
    n_tiles = max(_cdiv(M8, tm), 2 if M8 >= 16 else 1)
    TM = _round_up(_cdiv(M8, n_tiles), 8)
    while fused_need(TM) > budget and TM > 8:       # shrink rows before giving up on residency
        TM = max(8, _round_up(TM // 2, 8))
    n_tiles = _cdiv(M8, TM)
    Mp = n_tiles * TM

    use_fused = (not force_tiled) and fused_need(TM) <= budget

    def pad2(a, rows, cols, dt):
        return jnp.pad(a, ((0, rows - a.shape[0]), (0, cols - a.shape[1]))).astype(dt)

    # Only touch x when genuinely misaligned; otherwise pass the original array
    # and cast on the VPU inside the kernel (no extra wrapper-side HBM pass).
    if Mp != M or Kp != K:
        x_op = pad2(x2d, Mp, Kp, cdt)
    else:
        x_op = x2d

    w1p = pad2(w1_main, Kp, H1p, cdt)
    w2p = pad2(w2, H1p, H2p, cdt)
    w3p = pad2(w3, H2p, Rp, cdt)
    b1p = pad2(b1_eff, 1, H1p, jnp.float32)
    b2p = pad2(b2, 1, H2p, jnp.float32)
    b3p = pad2(b3, 1, Rp, jnp.float32)

    if use_fused:
        cost = pl.CostEstimate(
            flops=2 * M * (K * H1 + H1 * H2 + H2 * R),
            transcendentals=0,
            bytes_accessed=int(M * K * xb + weight_bytes + bias_bytes + M * R * ob),
        )

        def call_fused(single_buffer_weights):
            need = fused_need(TM, single_buffer_weights)
            vmem_limit = int(min(budget, max(int(1.3 * need), 4 << 20)))
            wkw = {"pipeline_mode": pl.Buffered(1)} if single_buffer_weights else {}

            def wspec(shape):   # grid-invariant, VMEM-resident weight/bias block
                return pl.BlockSpec(shape, lambda i: (0, 0), **wkw)

            return pl.pallas_call(
                _fused_mlp_kernel,
                out_shape=jax.ShapeDtypeStruct((Mp, Rp), out_dtype),
                grid=(Mp // TM,),
                in_specs=[
                    pl.BlockSpec((TM, Kp), lambda i: (i, 0)),   # pipelined row tile of x
                    wspec((Kp, H1p)), wspec((1, H1p)),
                    wspec((H1p, H2p)), wspec((1, H2p)),
                    wspec((H2p, Rp)), wspec((1, Rp)),
                ],
                out_specs=pl.BlockSpec((TM, Rp), lambda i: (i, 0)),
                compiler_params=pltpu.CompilerParams(
                    dimension_semantics=("parallel",),          # shard rows across TCs on v7x
                    vmem_limit_bytes=vmem_limit,
                ),
                cost_estimate=cost,
            )(x_op, w1p, b1p, w2p, b2p, w3p, b3p)

        try:
            out_padded = call_fused(True)        # single-buffered resident weights
        except Exception:
            out_padded = call_fused(False)       # fallback: default double buffering
    else:
        # Weight-tiled fallback: stream weight tiles instead of keeping all
        # three padded matrices VMEM-resident (huge H1/H2 on v7x's 64 MiB VMEM).
        h1 = _tiled_linear(x_op, w1p, b1p, slope=0.01, out_dtype=cdt, tm=TM, budget=budget)
        h2 = _tiled_linear(h1, w2p, b2p, slope=0.01, out_dtype=cdt, tm=TM, budget=budget)
        out_padded = _tiled_linear(h2, w3p, b3p, slope=None, out_dtype=out_dtype,
                                   tm=TM, budget=budget)

    return out_padded[:M, :R].reshape(B, FEW, R)


# ------------------------- init / reference / driver -------------------------


def init_params(key, embed_size, num_hidden1, num_hidden2, r_dim, dtype=jnp.float32):
    """Deterministic init mimicking nn.Linear's uniform(-1/sqrt(fan_in), 1/sqrt(fan_in))."""
    d_in = 2 * embed_size + 1
    ks = jax.random.split(key, 6)

    def lin(kw, kb, fan_in, fan_out):
        bound = 1.0 / jnp.sqrt(fan_in)
        w = jax.random.uniform(kw, (fan_in, fan_out), dtype, -bound, bound)
        b = jax.random.uniform(kb, (1, fan_out), dtype, -bound, bound)
        return w, b

    w1, b1 = lin(ks[0], ks[1], d_in, num_hidden1)
    w2, b2 = lin(ks[2], ks[3], num_hidden1, num_hidden2)
    w3, b3 = lin(ks[4], ks[5], num_hidden2, r_dim)
    return {"w1": w1, "b1": b1, "w2": w2, "b2": b2, "w3": w3, "b3": b3}


def _reference_forward(inputs, y, params):
    """Plain-JAX reference for correctness check (eval-mode dropout)."""
    B, FEW = inputs.shape[0], inputs.shape[1]
    x = inputs.reshape(B, FEW, -1)
    label_val = 1.0 if y == 1 else 0.0
    label = jnp.full((B, FEW, 1), label_val, dtype=x.dtype)
    x = jnp.concatenate([x, label], axis=-1)
    h1 = _leaky_relu(x @ params["w1"] + params["b1"][0])
    h2 = _leaky_relu(h1 @ params["w2"] + params["b2"][0])
    return h2 @ params["w3"] + params["b3"][0]


if __name__ == "__main__":
    # Small shapes consistent with the module: inputs (B, few, 2, embed_size)
    # -> viewed as (B, few, 2*embed_size).
    B, FEW = 2, 8
    embed_size, num_hidden1, num_hidden2, r_dim = 16, 64, 32, 16

    key = jax.random.PRNGKey(0)
    k_in, k_par = jax.random.split(key)
    inputs = jax.random.normal(k_in, (B, FEW, 2, embed_size), dtype=jnp.float32)
    params = init_params(k_par, embed_size, num_hidden1, num_hidden2, r_dim)

    for y in (1, 0):
        ref = _reference_forward(inputs, y, params)

        # f32 compute path (strict check).
        out_f32 = jax.block_until_ready(
            relation_latent_encoder_forward(inputs, y, params,
                                            compute_dtype=jnp.float32))
        assert out_f32.shape == (B, FEW, r_dim), out_f32.shape
        assert jnp.allclose(out_f32, ref, atol=1e-4, rtol=1e-4), \
            f"f32 mismatch vs reference (y={y})"

        # bf16-on-MXU / f32-accumulate path (perf default; looser tolerance).
        out_bf16 = jax.block_until_ready(
            relation_latent_encoder_forward(inputs, y, params,
                                            compute_dtype=jnp.bfloat16))
        assert out_bf16.shape == (B, FEW, r_dim), out_bf16.shape
        assert jnp.allclose(out_bf16, ref, atol=3e-2, rtol=3e-2), \
            f"bf16 mismatch vs reference (y={y})"

    # Validate the weight-tiled fallback path (used automatically when the
    # resident-weight layout would exceed the per-generation VMEM budget).
    ref1 = _reference_forward(inputs, 1, params)
    out_tiled = jax.block_until_ready(
        relation_latent_encoder_forward(inputs, 1, params,
                                        compute_dtype=jnp.float32, force_tiled=True))
    assert out_tiled.shape == (B, FEW, r_dim), out_tiled.shape
    assert jnp.allclose(out_tiled, ref1, atol=1e-4, rtol=1e-4), \
        "tiled-fallback mismatch vs reference"

    print("KERNEL_OK")
</pallas_src>

<mosaic_0001>
module attributes {stable_mosaic.version = 11 : i64} {
  func.func @_fused_mlp_kernel(%arg0: i32, %arg1: memref<8x128xf32, #tpu.memory_space<vmem>>, %arg2: memref<128x128xf32, #tpu.memory_space<vmem>>, %arg3: memref<1x128xf32, #tpu.memory_space<vmem>>, %arg4: memref<128x128xf32, #tpu.memory_space<vmem>>, %arg5: memref<1x128xf32, #tpu.memory_space<vmem>>, %arg6: memref<128x128xf32, #tpu.memory_space<vmem>>, %arg7: memref<1x128xf32, #tpu.memory_space<vmem>>, %arg8: memref<8x128xf32, #tpu.memory_space<vmem>>) attributes {dimension_semantics = [#tpu.dimension_semantics<parallel>], iteration_bounds = array<i64: 2>, scalar_prefetch = 0 : i64, scratch_operands = 0 : i64, tpu.core_type = #tpu.core_type<tc>, window_params = [{transform_indices = @transform_0, window_bounds = array<i64: 8, 128>}, {pipeline_mode = #tpu.pipeline_mode<synchronous>, transform_indices = @transform_1, window_bounds = array<i64: 128, 128>}, {pipeline_mode = #tpu.pipeline_mode<synchronous>, transform_indices = @transform_2, window_bounds = array<i64: 1, 128>}, {pipeline_mode = #tpu.pipeline_mode<synchronous>, transform_indices = @transform_3, window_bounds = array<i64: 128, 128>}, {pipeline_mode = #tpu.pipeline_mode<synchronous>, transform_indices = @transform_4, window_bounds = array<i64: 1, 128>}, {pipeline_mode = #tpu.pipeline_mode<synchronous>, transform_indices = @transform_5, window_bounds = array<i64: 128, 128>}, {pipeline_mode = #tpu.pipeline_mode<synchronous>, transform_indices = @transform_6, window_bounds = array<i64: 1, 128>}, {transform_indices = @transform_7, window_bounds = array<i64: 8, 128>}]} {
    %c0 = arith.constant 0 : index
    %c0_0 = arith.constant 0 : index
    %0 = vector.load %arg1[%c0, %c0_0] : memref<8x128xf32, #tpu.memory_space<vmem>>, vector<8x128xf32>
    %c0_1 = arith.constant 0 : index
    %c0_2 = arith.constant 0 : index
    %1 = vector.load %arg2[%c0_1, %c0_2] : memref<128x128xf32, #tpu.memory_space<vmem>>, vector<128x128xf32>
    %cst = arith.constant dense<0.000000e+00> : vector<8x128xf32>
    %2 = tpu.matmul %0, %1, %cst {dimension_numbers = #tpu.dot_dimension_numbers<[1], [0], [0], [1], [0, 0, 1, 1], [], []>} : vector<8x128xf32>, vector<128x128xf32>, vector<8x128xf32> -> vector<8x128xf32>
    %c0_3 = arith.constant 0 : index
    %c0_4 = arith.constant 0 : index
    %3 = vector.load %arg3[%c0_3, %c0_4] : memref<1x128xf32, #tpu.memory_space<vmem>>, vector<1x128xf32>
    %4 = vector.broadcast %3 : vector<1x128xf32> to vector<8x128xf32>
    %5 = arith.addf %2, %4 : vector<8x128xf32>
    %cst_5 = arith.constant 0.00999999977 : f32
    %6 = vector.broadcast %cst_5 : f32 to vector<8x128xf32>
    %7 = arith.mulf %6, %5 : vector<8x128xf32>
    %8 = arith.maximumf %5, %7 : vector<8x128xf32>
    %c0_6 = arith.constant 0 : index
    %c0_7 = arith.constant 0 : index
    %9 = vector.load %arg4[%c0_6, %c0_7] : memref<128x128xf32, #tpu.memory_space<vmem>>, vector<128x128xf32>
    %cst_8 = arith.constant dense<0.000000e+00> : vector<8x128xf32>
    %10 = tpu.matmul %8, %9, %cst_8 {dimension_numbers = #tpu.dot_dimension_numbers<[1], [0], [0], [1], [0, 0, 1, 1], [], []>} : vector<8x128xf32>, vector<128x128xf32>, vector<8x128xf32> -> vector<8x128xf32>
    %c0_9 = arith.constant 0 : index
    %c0_10 = arith.constant 0 : index
    %11 = vector.load %arg5[%c0_9, %c0_10] : memref<1x128xf32, #tpu.memory_space<vmem>>, vector<1x128xf32>
    %12 = vector.broadcast %11 : vector<1x128xf32> to vector<8x128xf32>
    %13 = arith.addf %10, %12 : vector<8x128xf32>
    %cst_11 = arith.constant 0.00999999977 : f32
    %14 = vector.broadcast %cst_11 : f32 to vector<8x128xf32>
    %15 = arith.mulf %14, %13 : vector<8x128xf32>
    %16 = arith.maximumf %13, %15 : vector<8x128xf32>
    %c0_12 = arith.constant 0 : index
    %c0_13 = arith.constant 0 : index
    %17 = vector.load %arg6[%c0_12, %c0_13] : memref<128x128xf32, #tpu.memory_space<vmem>>, vector<128x128xf32>
    %cst_14 = arith.constant dense<0.000000e+00> : vector<8x128xf32>
    %18 = tpu.matmul %16, %17, %cst_14 {dimension_numbers = #tpu.dot_dimension_numbers<[1], [0], [0], [1], [0, 0, 1, 1], [], []>} : vector<8x128xf32>, vector<128x128xf32>, vector<8x128xf32> -> vector<8x128xf32>
    %c0_15 = arith.constant 0 : index
    %c0_16 = arith.constant 0 : index
    %19 = vector.load %arg7[%c0_15, %c0_16] : memref<1x128xf32, #tpu.memory_space<vmem>>, vector<1x128xf32>
    %20 = vector.broadcast %19 : vector<1x128xf32> to vector<8x128xf32>
    %21 = arith.addf %18, %20 : vector<8x128xf32>
    %c0_17 = arith.constant 0 : index
    %c0_18 = arith.constant 0 : index
    %22 = vector.load %arg8[%c0_17, %c0_18] : memref<8x128xf32, #tpu.memory_space<vmem>>, vector<8x128xf32>
    tpu.vector_store %arg8[%c0_17, %c0_18], %21 {strides = array<i32>} : memref<8x128xf32, #tpu.memory_space<vmem>>, vector<8x128xf32>,
    return
  }
  func.func @transform_0(%arg0: i32) -> (i32, i32) {
    %c0_i32 = arith.constant 0 : i32
    %c0_i32_0 = arith.constant 0 : i32
    return %arg0, %c0_i32 : i32, i32
  }
  func.func @transform_1(%arg0: i32) -> (i32, i32) {
    %c0_i32 = arith.constant 0 : i32
    %c0_i32_0 = arith.constant 0 : i32
    %c0_i32_1 = arith.constant 0 : i32
    return %c0_i32, %c0_i32_0 : i32, i32
  }
  func.func @transform_2(%arg0: i32) -> (i32, i32) {
    %c0_i32 = arith.constant 0 : i32
    %c0_i32_0 = arith.constant 0 : i32
    %c0_i32_1 = arith.constant 0 : i32
    return %c0_i32, %c0_i32_0 : i32, i32
  }
  func.func @transform_3(%arg0: i32) -> (i32, i32) {
    %c0_i32 = arith.constant 0 : i32
    %c0_i32_0 = arith.constant 0 : i32
    %c0_i32_1 = arith.constant 0 : i32
    return %c0_i32, %c0_i32_0 : i32, i32
  }
  func.func @transform_4(%arg0: i32) -> (i32, i32) {
    %c0_i32 = arith.constant 0 : i32
    %c0_i32_0 = arith.constant 0 : i32
    %c0_i32_1 = arith.constant 0 : i32
    return %c0_i32, %c0_i32_0 : i32, i32
  }
  func.func @transform_5(%arg0: i32) -> (i32, i32) {
    %c0_i32 = arith.constant 0 : i32
    %c0_i32_0 = arith.constant 0 : i32
    %c0_i32_1 = arith.constant 0 : i32
    return %c0_i32, %c0_i32_0 : i32, i32
  }
  func.func @transform_6(%arg0: i32) -> (i32, i32) {
    %c0_i32 = arith.constant 0 : i32
    %c0_i32_0 = arith.constant 0 : i32
    %c0_i32_1 = arith.constant 0 : i32
    return %c0_i32, %c0_i32_0 : i32, i32
  }
  func.func @transform_7(%arg0: i32) -> (i32, i32) {
    %c0_i32 = arith.constant 0 : i32
    %c0_i32_0 = arith.constant 0 : i32
    return %arg0, %c0_i32 : i32, i32
  }
}

module attributes {stable_mosaic.version = 11 : i64} {
  func.func @_fused_mlp_kernel(%arg0: i32, %arg1: memref<8x128xf32, #tpu.memory_space<vmem>>, %arg2: memref<128x128xf32, #tpu.memory_space<vmem>>, %arg3: memref<1x128xf32, #tpu.memory_space<vmem>>, %arg4: memref<128x128xf32, #tpu.memory_space<vmem>>, %arg5: memref<1x128xf32, #tpu.memory_space<vmem>>, %arg6: memref<128x128xf32, #tpu.memory_space<vmem>>, %arg7: memref<1x128xf32, #tpu.memory_space<vmem>>, %arg8: memref<8x128xf32, #tpu.memory_space<vmem>>) attributes {dimension_semantics = [#tpu.dimension_semantics<parallel>], iteration_bounds = array<i64: 2>, scalar_prefetch = 0 : i64, scratch_operands = 0 : i64, tpu.core_type = #tpu.core_type<tc>, window_params = [{transform_indices = @transform_0, window_bounds = array<i64: 8, 128>}, {pipeline_mode = #tpu.pipeline_mode<synchronous>, transform_indices = @transform_1, window_bounds = array<i64: 128, 128>}, {pipeline_mode = #tpu.pipeline_mode<synchronous>, transform_indices = @transform_2, window_bounds = array<i64: 1, 128>}, {pipeline_mode = #tpu.pipeline_mode<synchronous>, transform_indices = @transform_3, window_bounds = array<i64: 128, 128>}, {pipeline_mode = #tpu.pipeline_mode<synchronous>, transform_indices = @transform_4, window_bounds = array<i64: 1, 128>}, {pipeline_mode = #tpu.pipeline_mode<synchronous>, transform_indices = @transform_5, window_bounds = array<i64: 128, 128>}, {pipeline_mode = #tpu.pipeline_mode<synchronous>, transform_indices = @transform_6, window_bounds = array<i64: 1, 128>}, {transform_indices = @transform_7, window_bounds = array<i64: 8, 128>}]} {
    %c0 = arith.constant 0 : index
    %c0_0 = arith.constant 0 : index
    %0 = vector.load %arg1[%c0, %c0_0] : memref<8x128xf32, #tpu.memory_space<vmem>>, vector<8x128xf32>
    %c0_1 = arith.constant 0 : index
    %c0_2 = arith.constant 0 : index
    %1 = vector.load %arg2[%c0_1, %c0_2] : memref<128x128xf32, #tpu.memory_space<vmem>>, vector<128x128xf32>
    %cst = arith.constant dense<0.000000e+00> : vector<8x128xf32>
    %2 = tpu.matmul %0, %1, %cst {dimension_numbers = #tpu.dot_dimension_numbers<[1], [0], [0], [1], [0, 0, 1, 1], [], []>} : vector<8x128xf32>, vector<128x128xf32>, vector<8x128xf32> -> vector<8x128xf32>
    %c0_3 = arith.constant 0 : index
    %c0_4 = arith.constant 0 : index
    %3 = vector.load %arg3[%c0_3, %c0_4] : memref<1x128xf32, #tpu.memory_space<vmem>>, vector<1x128xf32>
    %4 = vector.broadcast %3 : vector<1x128xf32> to vector<8x128xf32>
    %5 = arith.addf %2, %4 : vector<8x128xf32>
    %cst_5 = arith.constant 0.00999999977 : f32
    %6 = vector.broadcast %cst_5 : f32 to vector<8x128xf32>
    %7 = arith.mulf %6, %5 : vector<8x128xf32>
    %8 = arith.maximumf %5, %7 : vector<8x128xf32>
    %c0_6 = arith.constant 0 : index
    %c0_7 = arith.constant 0 : index
    %9 = vector.load %arg4[%c0_6, %c0_7] : memref<128x128xf32, #tpu.memory_space<vmem>>, vector<128x128xf32>
    %cst_8 = arith.constant dense<0.000000e+00> : vector<8x128xf32>
    %10 = tpu.matmul %8, %9, %cst_8 {dimension_numbers = #tpu.dot_dimension_numbers<[1], [0], [0], [1], [0, 0, 1, 1], [], []>} : vector<8x128xf32>, vector<128x128xf32>, vector<8x128xf32> -> vector<8x128xf32>
    %c0_9 = arith.constant 0 : index
    %c0_10 = arith.constant 0 : index
    %11 = vector.load %arg5[%c0_9, %c0_10] : memref<1x128xf32, #tpu.memory_space<vmem>>, vector<1x128xf32>
    %12 = vector.broadcast %11 : vector<1x128xf32> to vector<8x128xf32>
    %13 = arith.addf %10, %12 : vector<8x128xf32>
    %cst_11 = arith.constant 0.00999999977 : f32
    %14 = vector.broadcast %cst_11 : f32 to vector<8x128xf32>
    %15 = arith.mulf %14, %13 : vector<8x128xf32>
    %16 = arith.maximumf %13, %15 : vector<8x128xf32>
    %c0_12 = arith.constant 0 : index
    %c0_13 = arith.constant 0 : index
    %17 = vector.load %arg6[%c0_12, %c0_13] : memref<128x128xf32, #tpu.memory_space<vmem>>, vector<128x128xf32>
    %cst_14 = arith.constant dense<0.000000e+00> : vector<8x128xf32>
    %18 = tpu.matmul %16, %17, %cst_14 {dimension_numbers = #tpu.dot_dimension_numbers<[1], [0], [0], [1], [0, 0, 1, 1], [], []>} : vector<8x128xf32>, vector<128x128xf32>, vector<8x128xf32> -> vector<8x128xf32>
    %c0_15 = arith.constant 0 : index
    %c0_16 = arith.constant 0 : index
    %19 = vector.load %arg7[%c0_15, %c0_16] : memref<1x128xf32, #tpu.memory_space<vmem>>, vector<1x128xf32>
    %20 = vector.broadcast %19 : vector<1x128xf32> to vector<8x128xf32>
    %21 = arith.addf %18, %20 : vector<8x128xf32>
    %c0_17 = arith.constant 0 : index
    %c0_18 = arith.constant 0 : index
    %22 = vector.load %arg8[%c0_17, %c0_18] : memref<8x128xf32, #tpu.memory_space<vmem>>, vector<8x128xf32>
    tpu.vector_store %arg8[%c0_17, %c0_18], %21 {strides = array<i32>} : memref<8x128xf32, #tpu.memory_space<vmem>>, vector<8x128xf32>,
    return
  }
  func.func @transform_0(%arg0: i32) -> (i32, i32) {
    %c0_i32 = arith.constant 0 : i32
    %c0_i32_0 = arith.constant 0 : i32
    return %arg0, %c0_i32 : i32, i32
  }
  func.func @transform_1(%arg0: i32) -> (i32, i32) {
    %c0_i32 = arith.constant 0 : i32
    %c0_i32_0 = arith.constant 0 : i32
    %c0_i32_1 = arith.constant 0 : i32
    return %c0_i32, %c0_i32_0 : i32, i32
  }
  func.func @transform_2(%arg0: i32) -> (i32, i32) {
    %c0_i32 = arith.constant 0 : i32
    %c0_i32_0 = arith.constant 0 : i32
    %c0_i32_1 = arith.constant 0 : i32
    return %c0_i32, %c0_i32_0 : i32, i32
  }
  func.func @transform_3(%arg0: i32) -> (i32, i32) {
    %c0_i32 = arith.constant 0 : i32
    %c0_i32_0 = arith.constant 0 : i32
    %c0_i32_1 = arith.constant 0 : i32
    return %c0_i32, %c0_i32_0 : i32, i32
  }
  func.func @transform_4(%arg0: i32) -> (i32, i32) {
    %c0_i32 = arith.constant 0 : i32
    %c0_i32_0 = arith.constant 0 : i32
    %c0_i32_1 = arith.constant 0 : i32
    return %c0_i32, %c0_i32_0 : i32, i32
  }
  func.func @transform_5(%arg0: i32) -> (i32, i32) {
    %c0_i32 = arith.constant 0 : i32
    %c0_i32_0 = arith.constant 0 : i32
    %c0_i32_1 = arith.constant 0 : i32
    return %c0_i32, %c0_i32_0 : i32, i32
  }
  func.func @transform_6(%arg0: i32) -> (i32, i32) {
    %c0_i32 = arith.constant 0 : i32
    %c0_i32_0 = arith.constant 0 : i32
    %c0_i32_1 = arith.constant 0 : i32
    return %c0_i32, %c0_i32_0 : i32, i32
  }
  func.func @transform_7(%arg0: i32) -> (i32, i32) {
    %c0_i32 = arith.constant 0 : i32
    %c0_i32_0 = arith.constant 0 : i32
    return %arg0, %c0_i32 : i32, i32
  }
}

</mosaic_0001>

<llo_original>
// kernel: tpu_custom_call.1
$region0: #{tpu_custom_call.1}
  #allocation0 [shape = 'u32[]', space=smem, size = 0x4, offset = 0x4, fixed_abs, tag = 'smem constant byte address 0x4 - core index']
  #allocation1 [shape = 'u32[144,128]{1,0:T(1,128)}', space=vmem, size = 0x12000, scoped, tag = 'internal scratch']
  %s0 = inlined_call_operand.hbm [shape: f32[16,128], index: 0, kind: input, shape index: {}]
  %s1 = inlined_call_operand.hbm [shape: f32[128,128], index: 1, kind: input, shape index: {}]
  %s2 = inlined_call_operand.vmem [shape: f32[1,128], index: 2, kind: input, shape index: {}]
  %s3 = inlined_call_operand.hbm [shape: f32[128,128], index: 3, kind: input, shape index: {}]
  %s4 = inlined_call_operand.vmem [shape: f32[1,128], index: 4, kind: input, shape index: {}]
  %s5 = inlined_call_operand.hbm [shape: f32[128,128], index: 5, kind: input, shape index: {}]
  %s6 = inlined_call_operand.vmem [shape: f32[1,128], index: 6, kind: input, shape index: {}]
  %s7 = inlined_call_operand.hbm [shape: f32[16,128], index: 7, kind: output, shape index: {}]
  %s8 = sld [smem:[#allocation0]]
  $region77: #{tpu_custom_call.1} parent=0
    _
  %s10 = ssub.s32 1, %s8
  %s11 = scalar_select 0, %s10, %s8
  $region1: #{tpu_custom_call.1} parent=0
    #allocation2 [shape = 'u8[8192]{0}', space=vmem, size = 0x2000, scoped, tag = 'input window, operand 0']
    #allocation3 [shape = 's32[2]{0}', space=sflag, size = 0x8, scoped, tag = 'scoped memory for tpu_custom_call.1']
    #allocation4 [shape = 's32[2]{0}', space=sflag, size = 0x8, scoped, tag = 'scoped memory for tpu_custom_call.1']
    #allocation5 [shape = 'u8[65536]{0}', space=vmem, size = 0x10000, scoped, tag = 'input window, operand 1, single buffered']
    #allocation6 [shape = 's32[1]{0}', space=sflag, size = 0x4, scoped, tag = 'scoped memory for tpu_custom_call.1']
    #allocation7 [shape = 'u8[65536]{0}', space=vmem, size = 0x10000, scoped, tag = 'input window, operand 3, single buffered']
    #allocation8 [shape = 'u8[65536]{0}', space=vmem, size = 0x10000, scoped, tag = 'input window, operand 5, single buffered']
    #allocation9 [shape = 's32[1]{0}', space=sflag, size = 0x4, scoped, tag = 'scoped memory for tpu_custom_call.1']
    #allocation10 [shape = 'u8[8192]{0}', space=vmem, size = 0x2000, scoped, tag = 'output window, operand 0']
    %12 = vsyncpa [#allocation3], 0
    %s13 = scalar_lea.sflag [#allocation3], 1
    %14 = vsyncpa %s13, 0
    %15 = vsyncpa [#allocation6], 0
    %16 = vsyncpa [#allocation9], 0
    %17 = vsyncpa [#allocation4], 0
    %s18 = scalar_lea.sflag [#allocation4], 1
    %19 = vsyncpa %s18, 0
    loop: start=0, step=1, limit=4
    $region2: #{tpu_custom_call.1} parent=1 // loop_pre_header
      _
    $region3: #{tpu_custom_call.1} parent=1 // loop_header
      %s21 = sphi 0, %s25
      %p22 = scmp.ge.s32.totalorder %s21, 4
      %s31 = sphi 0, %s33
      %s34 = sphi 0, %s31
      %s35 = sphi 0, %s34
      %s51 = sphi 0, %s35
      %s55 = sphi 0, %s55
      %s57 = sphi 0, %s55
      %s58 = sphi 0, %s57
      %s72 = sphi 0, %s58
      %s76 = sphi 0, %s76
      %s78 = sphi 0, %s76
      %s79 = sphi 0, %s78
      %s93 = sphi 0, %s79
      %s97 = sphi 0, %s97
      %s99 = sphi 0, %s97
      %s100 = sphi 0, %s99
      %s114 = sphi 0, %s100
      %s118 = sphi 0, %s118
      %s120 = sphi 0, %s118
      %s121 = sphi 0, %s120
      %s135 = sphi 0, %s121
      %s139 = sphi 0, %s139
      %s141 = sphi 0, %s139
      %s142 = sphi 0, %s141
      %s156 = sphi 0, %s142
      %s160 = sphi 0, %s160
      %s162 = sphi 0, %s160
      %s163 = sphi 0, %s162
      %s177 = sphi 0, %s163
      %s183 = sphi 0, %s185
      %s186 = sphi 0, %s183
      %s187 = sphi 0, %s186
      %s203 = sphi 0, %s187
    $region4: #{tpu_custom_call.1} parent=1 // loop_header_branch
      %24 = sbr.rel (%p22) target = $region8
    $region5: #{tpu_custom_call.1} parent=1 // loop_body
      %s26 = ssub.s32 %s21, 1
      %s27 = ssub.s32 %s21, 2
      %s28 = sadd.s32 %s21, 1
      %s29 = ssub.s32 %s21, %s28
      %p30 = scmp.eq.s32.totalorder %s29, 0
      %s32 = sadd.s32 %s31, 1
      %s33 = scalar_select %p30, %s31, %s32
      %p36 = pneg %p30
      %p37 = scmp.eq.s32.totalorder %s21, 1
      %p38 = por %p36, %p37
      %p39 = scmp.ne.s32.totalorder %s31, %s34
      %p40 = scmp.eq.s32.totalorder %s21, 0
      %p41 = por %p39, %p40
      %p42 = scmp.ne.s32.totalorder %s31, %s34
      %p43 = scmp.eq.s32.totalorder %s26, 1
      %p44 = por %p42, %p43
      %p45 = scmp.ne.s32.totalorder %s34, %s35
      %p46 = scmp.eq.s32.totalorder %s26, 0
      %p47 = por %p45, %p46
      %p48 = scmp.ne.s32.totalorder %s34, %s35
      %p49 = scmp.eq.s32.totalorder %s27, 1
      %p50 = por %p48, %p49
      %p52 = scmp.ne.s32.totalorder %s35, %s51
      %p53 = scmp.eq.s32.totalorder %s27, 0
      %p54 = por %p52, %p53
      %s56 = sadd.s32 %s55, 1
      %p59 = scmp.eq.s32.totalorder %s21, 1
      %p60 = scmp.ne.s32.totalorder %s55, %s57
      %p61 = scmp.eq.s32.totalorder %s21, 0
      %p62 = por %p60, %p61
      %p63 = scmp.ne.s32.totalorder %s55, %s57
      %p64 = scmp.eq.s32.totalorder %s26, 1
      %p65 = por %p63, %p64
      %p66 = scmp.ne.s32.totalorder %s57, %s58
      %p67 = scmp.eq.s32.totalorder %s26, 0
      %p68 = por %p66, %p67
      %p69 = scmp.ne.s32.totalorder %s57, %s58
      %p70 = scmp.eq.s32.totalorder %s27, 1
      %p71 = por %p69, %p70
      %p73 = scmp.ne.s32.totalorder %s58, %s72
      %p74 = scmp.eq.s32.totalorder %s27, 0
      %p75 = por %p73, %p74
      %s77 = sadd.s32 %s76, 1
      %p80 = scmp.eq.s32.totalorder %s21, 1
      %p81 = scmp.ne.s32.totalorder %s76, %s78
      %p82 = scmp.eq.s32.totalorder %s21, 0
      %p83 = por %p81, %p82
      %p84 = scmp.ne.s32.totalorder %s76, %s78
      %p85 = scmp.eq.s32.totalorder %s26, 1
      %p86 = por %p84, %p85
      %p87 = scmp.ne.s32.totalorder %s78, %s79
      %p88 = scmp.eq.s32.totalorder %s26, 0
      %p89 = por %p87, %p88
      %p90 = scmp.ne.s32.totalorder %s78, %s79
      %p91 = scmp.eq.s32.totalorder %s27, 1
      %p92 = por %p90, %p91
      %p94 = scmp.ne.s32.totalorder %s79, %s93
      %p95 = scmp.eq.s32.totalorder %s27, 0
      %p96 = por %p94, %p95
      %s98 = sadd.s32 %s97, 1
      %p101 = scmp.eq.s32.totalorder %s21, 1
      %p102 = scmp.ne.s32.totalorder %s97, %s99
      %p103 = scmp.eq.s32.totalorder %s21, 0
      %p104 = por %p102, %p103
      %p105 = scmp.ne.s32.totalorder %s97, %s99
      %p106 = scmp.eq.s32.totalorder %s26, 1
      %p107 = por %p105, %p106
      %p108 = scmp.ne.s32.totalorder %s99, %s100
      %p109 = scmp.eq.s32.totalorder %s26, 0
      %p110 = por %p108, %p109
      %p111 = scmp.ne.s32.totalorder %s99, %s100
      %p112 = scmp.eq.s32.totalorder %s27, 1
      %p113 = por %p111, %p112
      %p115 = scmp.ne.s32.totalorder %s100, %s114
      %p116 = scmp.eq.s32.totalorder %s27, 0
      %p117 = por %p115, %p116
      %s119 = sadd.s32 %s118, 1
      %p122 = scmp.eq.s32.totalorder %s21, 1
      %p123 = scmp.ne.s32.totalorder %s118, %s120
      %p124 = scmp.eq.s32.totalorder %s21, 0
      %p125 = por %p123, %p124
      %p126 = scmp.ne.s32.totalorder %s118, %s120
      %p127 = scmp.eq.s32.totalorder %s26, 1
      %p128 = por %p126, %p127
      %p129 = scmp.ne.s32.totalorder %s120, %s121
      %p130 = scmp.eq.s32.totalorder %s26, 0
      %p131 = por %p129, %p130
      %p132 = scmp.ne.s32.totalorder %s120, %s121
      %p133 = scmp.eq.s32.totalorder %s27, 1
      %p134 = por %p132, %p133
      %p136 = scmp.ne.s32.totalorder %s121, %s135
      %p137 = scmp.eq.s32.totalorder %s27, 0
      %p138 = por %p136, %p137
      %s140 = sadd.s32 %s139, 1
      %p143 = scmp.eq.s32.totalorder %s21, 1
      %p144 = scmp.ne.s32.totalorder %s139, %s141
      %p145 = scmp.eq.s32.totalorder %s21, 0
      %p146 = por %p144, %p145
      %p147 = scmp.ne.s32.totalorder %s139, %s141
      %p148 = scmp.eq.s32.totalorder %s26, 1
      %p149 = por %p147, %p148
      %p150 = scmp.ne.s32.totalorder %s141, %s142
      %p151 = scmp.eq.s32.totalorder %s26, 0
      %p152 = por %p150, %p151
      %p153 = scmp.ne.s32.totalorder %s141, %s142
      %p154 = scmp.eq.s32.totalorder %s27, 1
      %p155 = por %p153, %p154
      %p157 = scmp.ne.s32.totalorder %s142, %s156
      %p158 = scmp.eq.s32.totalorder %s27, 0
      %p159 = por %p157, %p158
      %s161 = sadd.s32 %s160, 1
      %p164 = scmp.eq.s32.totalorder %s21, 1
      %p165 = scmp.ne.s32.totalorder %s160, %s162
      %p166 = scmp.eq.s32.totalorder %s21, 0
      %p167 = por %p165, %p166
      %p168 = scmp.ne.s32.totalorder %s160, %s162
      %p169 = scmp.eq.s32.totalorder %s26, 1
      %p170 = por %p168, %p169
      %p171 = scmp.ne.s32.totalorder %s162, %s163
      %p172 = scmp.eq.s32.totalorder %s26, 0
      %p173 = por %p171, %p172
      %p174 = scmp.ne.s32.totalorder %s162, %s163
      %p175 = scmp.eq.s32.totalorder %s27, 1
      %p176 = por %p174, %p175
      %p178 = scmp.ne.s32.totalorder %s163, %s177
      %p179 = scmp.eq.s32.totalorder %s27, 0
      %p180 = por %p178, %p179
      %s181 = ssub.s32 %s21, %s28
      %p182 = scmp.eq.s32.totalorder %s181, 0
      %s184 = sadd.s32 %s183, 1
      %s185 = scalar_select %p182, %s183, %s184
      %p188 = pneg %p182
      %p189 = scmp.eq.s32.totalorder %s21, 1
      %p190 = por %p188, %p189
      %p191 = scmp.ne.s32.totalorder %s183, %s186
      %p192 = scmp.eq.s32.totalorder %s21, 0
      %p193 = por %p191, %p192
      %p194 = scmp.ne.s32.totalorder %s183, %s186
      %p195 = scmp.eq.s32.totalorder %s26, 1
      %p196 = por %p194, %p195
      %p197 = scmp.ne.s32.totalorder %s186, %s187
      %p198 = scmp.eq.s32.totalorder %s26, 0
      %p199 = por %p197, %p198
      %p200 = scmp.ne.s32.totalorder %s186, %s187
      %p201 = scmp.eq.s32.totalorder %s27, 1
      %p202 = por %p200, %p201
      %p204 = scmp.ne.s32.totalorder %s187, %s203
      %p205 = scmp.eq.s32.totalorder %s27, 0
      %p206 = por %p204, %p205
      %p207 = scmp.le.s32.totalorder 1, %s21
      %p208 = scmp.lt.s32.totalorder %s21, 3
      %p209 = pnand %p207, %p208
      %p210 = pneg %p209
      // Predicated region
      $region9: #{tpu_custom_call.1} parent=5 // pred_check
        _
      $region10: #{tpu_custom_call.1} parent=5 // pred_check_branch
        %212 = sbr.rel (%p209) target = $region12
      $region11: #{tpu_custom_call.1} parent=5 // pred_region
        %s213 = ssub.s32 %s21, 1
        // Predicated region
        $region13: #{tpu_custom_call.1} parent=11 // pred_check
          %p214 = pneg %p68
        $region14: #{tpu_custom_call.1} parent=11 // pred_check_branch
          %216 = sbr.rel (%p214) target = $region16
        $region15: #{tpu_custom_call.1} parent=11 // pred_region
          %s218 = ssub.s32 2048, 2048
          %219 = vsyncadd [#allocation6], %s218
          %s220 = sshll.u32 [#allocation5], 4
          %s221 = int_to_ptr.vmem [resolvable:$true] %s220
          %226 = dma.hbm_to_vmem [thread:$0]  %s1, 2048, %s221, [#allocation6], 128, 128, 8
        $region16: #{tpu_custom_call.1} parent=11 // pred_fallthru
          _
        // Predicated region
        $region17: #{tpu_custom_call.1} parent=11 // pred_check
          %p227 = pneg %p89
        $region18: #{tpu_custom_call.1} parent=11 // pred_check_branch
          %229 = sbr.rel (%p227) target = $region20
        $region19: #{tpu_custom_call.1} parent=11 // pred_region
          _
        $region20: #{tpu_custom_call.1} parent=11 // pred_fallthru
          _
        // Predicated region
        $region21: #{tpu_custom_call.1} parent=11 // pred_check
          %p230 = pneg %p110
        $region22: #{tpu_custom_call.1} parent=11 // pred_check_branch
          %232 = sbr.rel (%p230) target = $region24
        $region23: #{tpu_custom_call.1} parent=11 // pred_region
          %s234 = ssub.s32 2048, 2048
          %235 = vsyncadd [#allocation6], %s234
          %s236 = sshll.u32 [#allocation7], 4
          %s237 = int_to_ptr.vmem [resolvable:$true] %s236
          %242 = dma.hbm_to_vmem [thread:$0]  %s3, 2048, %s237, [#allocation6], 128, 128, 8
        $region24: #{tpu_custom_call.1} parent=11 // pred_fallthru
          _
        // Predicated region
        $region25: #{tpu_custom_call.1} parent=11 // pred_check
          %p243 = pneg %p131
        $region26: #{tpu_custom_call.1} parent=11 // pred_check_branch
          %245 = sbr.rel (%p243) target = $region28
        $region27: #{tpu_custom_call.1} parent=11 // pred_region
          _
        $region28: #{tpu_custom_call.1} parent=11 // pred_fallthru
          _
        // Predicated region
        $region29: #{tpu_custom_call.1} parent=11 // pred_check
          %p246 = pneg %p152
        $region30: #{tpu_custom_call.1} parent=11 // pred_check_branch
          %248 = sbr.rel (%p246) target = $region32
        $region31: #{tpu_custom_call.1} parent=11 // pred_region
          %s250 = ssub.s32 2048, 2048
          %251 = vsyncadd [#allocation9], %s250
          %s252 = sshll.u32 [#allocation8], 4
          %s253 = int_to_ptr.vmem [resolvable:$true] %s252
          %258 = dma.hbm_to_vmem [thread:$0]  %s5, 2048, %s253, [#allocation9], 128, 128, 8
        $region32: #{tpu_custom_call.1} parent=11 // pred_fallthru
          _
        // Predicated region
        $region33: #{tpu_custom_call.1} parent=11 // pred_check
          %p259 = pneg %p173
        $region34: #{tpu_custom_call.1} parent=11 // pred_check_branch
          %261 = sbr.rel (%p259) target = $region36
        $region35: #{tpu_custom_call.1} parent=11 // pred_region
          _
        $region36: #{tpu_custom_call.1} parent=11 // pred_fallthru
          _
      $region12: #{tpu_custom_call.1} parent=5 // pred_fallthru
        _
      %p262 = scmp.lt.s32.totalorder %s21, 2
      // Predicated region
      $region37: #{tpu_custom_call.1} parent=5 // pred_check
        %p263 = pneg %p262
      $region38: #{tpu_custom_call.1} parent=5 // pred_check_branch
        %265 = sbr.rel (%p263) target = $region40
      $region39: #{tpu_custom_call.1} parent=5 // pred_region
        // Predicated region
        $region41: #{tpu_custom_call.1} parent=39 // pred_check
          %p266 = pneg %p41
        $region42: #{tpu_custom_call.1} parent=39 // pred_check_branch
          %268 = sbr.rel (%p266) target = $region44
        $region43: #{tpu_custom_call.1} parent=39 // pred_region
          %s269 = sand.u32 %s31, 1
          %s270 = scalar_lea.sflag [#allocation3], %s269
          %s271 = sand.u32 %s31, 1
          %s272 = smul.addr %s271, 8
          %s273 = scalar_lea.vmem [#allocation2], %s272
          %s275 = ssub.s32 128, 128
          %276 = vsyncadd %s270, %s275
          %s277 = smul.addr %s21, 128
          %s278 = scalar_lea.hbm %s0, %s277
          %s280 = sshll.u32 %s273, 4
          %s281 = int_to_ptr.vmem [resolvable:$true] %s280
          %283 = dma.hbm_to_vmem [thread:$0]  %s278, 128, %s281, %s270
        $region44: #{tpu_custom_call.1} parent=39 // pred_fallthru
          _
      $region40: #{tpu_custom_call.1} parent=5 // pred_fallthru
        _
      %p284 = scmp.le.s32.totalorder 1, %s21
      %p285 = scmp.lt.s32.totalorder %s21, 3
      %p286 = pnand %p284, %p285
      %p287 = pneg %p286
      // Predicated region
      $region45: #{tpu_custom_call.1} parent=5 // pred_check
        _
      $region46: #{tpu_custom_call.1} parent=5 // pred_check_branch
        %289 = sbr.rel (%p286) target = $region48
      $region47: #{tpu_custom_call.1} parent=5 // pred_region
        %s290 = ssub.s32 %s21, 1
        %s291 = sand.u32 %s34, 1
        %s292 = scalar_lea.sflag [#allocation3], %s291
        %s293 = sand.u32 %s34, 1
        %s294 = smul.addr %s293, 8
        %s295 = scalar_lea.vmem [#allocation2], %s294
        // Predicated region
        $region49: #{tpu_custom_call.1} parent=47 // pred_check
          %p296 = pneg %p47
        $region50: #{tpu_custom_call.1} parent=47 // pred_check_branch
          %298 = sbr.rel (%p296) target = $region52
        $region51: #{tpu_custom_call.1} parent=47 // pred_region
          %299 = dma.done %s292, 128
        $region52: #{tpu_custom_call.1} parent=47 // pred_fallthru
          _
        // Predicated region
        $region53: #{tpu_custom_call.1} parent=47 // pred_check
          %p300 = pneg %p68
        $region54: #{tpu_custom_call.1} parent=47 // pred_check_branch
          %302 = sbr.rel (%p300) target = $region56
        $region55: #{tpu_custom_call.1} parent=47 // pred_region
          %303 = dma.done [#allocation6], 2048
        $region56: #{tpu_custom_call.1} parent=47 // pred_fallthru
          _
        // Predicated region
        $region57: #{tpu_custom_call.1} parent=47 // pred_check
          %p304 = pneg %p110
        $region58: #{tpu_custom_call.1} parent=47 // pred_check_branch
          %306 = sbr.rel (%p304) target = $region60
        $region59: #{tpu_custom_call.1} parent=47 // pred_region
          %307 = dma.done [#allocation6], 2048
        $region60: #{tpu_custom_call.1} parent=47 // pred_fallthru
          _
        // Predicated region
        $region61: #{tpu_custom_call.1} parent=47 // pred_check
          %p308 = pneg %p152
        $region62: #{tpu_custom_call.1} parent=47 // pred_check_branch
          %310 = sbr.rel (%p308) target = $region64
        $region63: #{tpu_custom_call.1} parent=47 // pred_region
          %311 = dma.done [#allocation9], 2048
        $region64: #{tpu_custom_call.1} parent=47 // pred_fallthru
          _
        %s312 = sand.u32 %s34, 1
        %s313 = scalar_lea.sflag [#allocation3], %s312
        %s314 = sand.u32 %s34, 1
        %s315 = smul.addr %s314, 8
        %s316 = scalar_lea.vmem [#allocation2], %s315
        %p317 = pneg %p47
        %p318 = pneg %p44
        %p319 = pneg %p68
        %p320 = pneg %p65
        %p321 = pneg %p89
        %p322 = pneg %p86
        %p323 = pneg %p110
        %p324 = pneg %p107
        %p325 = pneg %p131
        %p326 = pneg %p128
        %p327 = pneg %p152
        %p328 = pneg %p149
        %p329 = pneg %p173
        %p330 = pneg %p170
        %p331 = pneg %p199
        %p332 = pneg %p196
        %s333 = sand.u32 %s186, 1
        %s334 = scalar_lea.sflag [#allocation4], %s333
        %s335 = sand.u32 %s186, 1
        %s336 = smul.addr %s335, 8
        %s337 = scalar_lea.vmem [#allocation10], %s336
        %v338 = vld [vmem:[%s295] sm:$0xff]
        %v339 = vld [vmem:[#allocation5] sm:$0xff]
        %v340 = vld [vmem:[#allocation5 + $0x8] sm:$0xff]
        %v341 = vld [vmem:[#allocation5 + $0x10] sm:$0xff]
        %v342 = vld [vmem:[#allocation5 + $0x18] sm:$0xff]
        %v343 = vld [vmem:[#allocation5 + $0x20] sm:$0xff]
        %v344 = vld [vmem:[#allocation5 + $0x28] sm:$0xff]
        %v345 = vld [vmem:[#allocation5 + $0x30] sm:$0xff]
        %v346 = vld [vmem:[#allocation5 + $0x38] sm:$0xff]
        %v347 = vld [vmem:[#allocation5 + $0x40] sm:$0xff]
        %v348 = vld [vmem:[#allocation5 + $0x48] sm:$0xff]
        %v349 = vld [vmem:[#allocation5 + $0x50] sm:$0xff]
        %v350 = vld [vmem:[#allocation5 + $0x58] sm:$0xff]
        %v351 = vld [vmem:[#allocation5 + $0x60] sm:$0xff]
        %v352 = vld [vmem:[#allocation5 + $0x68] sm:$0xff]
        %v353 = vld [vmem:[#allocation5 + $0x70] sm:$0xff]
        %v354 = vld [vmem:[#allocation5 + $0x78] sm:$0xff]
        %v355 = vld [vmem:[%s2] sm:$0x1]
        %v357 = vlaneseq
        %v358 = vshrl.u32 %v357, 7
        %v359 = vsub.s32 0, %v358
        %v360 = vrot.slane %v355, %v359
        %362 = vmatprep.subr.mxu0 0.0
        %363 = vmatpush1.msra.mxu0 %v354
        %364 = vmatprep.subr.mxu0 0.0
        %365 = vmatpush1.msra.mxu0 %v353
        %366 = vmatprep.subr.mxu0 0.0
        %367 = vmatpush1.msra.mxu0 %v352
        %368 = vmatprep.subr.mxu0 0.0
        %369 = vmatpush1.msra.mxu0 %v351
        %370 = vmatprep.subr.mxu0 0.0
        %371 = vmatpush1.msra.mxu0 %v350
        %372 = vmatprep.subr.mxu0 0.0
        %373 = vmatpush1.msra.mxu0 %v349
        %374 = vmatprep.subr.mxu0 0.0
        %375 = vmatpush1.msra.mxu0 %v348
        %376 = vmatprep.subr.mxu0 0.0
        %377 = vmatpush1.msra.mxu0 %v347
        %378 = vmatprep.subr.mxu0 0.0
        %379 = vmatpush1.msra.mxu0 %v346
        %380 = vmatprep.subr.mxu0 0.0
        %381 = vmatpush1.msra.mxu0 %v345
        %382 = vmatprep.subr.mxu0 0.0
        %383 = vmatpush1.msra.mxu0 %v344
        %384 = vmatprep.subr.mxu0 0.0
        %385 = vmatpush1.msra.mxu0 %v343
        %386 = vmatprep.subr.mxu0 0.0
        %387 = vmatpush1.msra.mxu0 %v342
        %388 = vmatprep.subr.mxu0 0.0
        %389 = vmatpush1.msra.mxu0 %v341
        %390 = vmatprep.subr.mxu0 0.0
        %391 = vmatpush1.msra.mxu0 %v340
        %392 = vmatprep.subr.mxu0 0.0
        %393 = vmatpush1.msra.mxu0 %v339
        %394 = vmatprep.subr.mxu0 0.0
        %395 = vmatpush2.msra.mxu0 0.0
        %396 = vmatprep.subr.mxu0 0.0
        %397 = vmatpush2.msra.mxu0 0.0
        %398 = vmatprep.subr.mxu0 0.0
        %399 = vmatpush2.msra.mxu0 0.0
        %400 = vmatprep.subr.mxu0 0.0
        %401 = vmatpush2.msra.mxu0 0.0
        %402 = vmatprep.subr.mxu0 0.0
        %403 = vmatpush2.msra.mxu0 0.0
        %404 = vmatprep.subr.mxu0 0.0
        %405 = vmatpush2.msra.mxu0 0.0
        %406 = vmatprep.subr.mxu0 0.0
        %407 = vmatpush2.msra.mxu0 0.0
        %408 = vmatprep.subr.mxu0 0.0
        %409 = vmatpush2.msra.mxu0 0.0
        %410 = vmatprep.subr.mxu0 0.0
        %411 = vmatpush2.msra.mxu0 0.0
        %412 = vmatprep.subr.mxu0 0.0
        %413 = vmatpush2.msra.mxu0 0.0
        %414 = vmatprep.subr.mxu0 0.0
        %415 = vmatpush2.msra.mxu0 0.0
        %416 = vmatprep.subr.mxu0 0.0
        %417 = vmatpush2.msra.mxu0 0.0
        %418 = vmatprep.subr.mxu0 0.0
        %419 = vmatpush2.msra.mxu0 0.0
        %420 = vmatprep.subr.mxu0 0.0
        %421 = vmatpush2.msra.mxu0 0.0
        %422 = vmatprep.subr.mxu0 0.0
        %423 = vmatpush2.msra.mxu0 0.0
        %424 = vmatprep.subr.mxu0 0.0
        %425 = vmatpush2.msra.mxu0 0.0
        %426 = vmatprep.mubr.f32.mxu0 0.0
        %427 = vmatmul.mubr.f32.gmra.mxu0 %v338
        %v428 = vpop.f32.mrf.mxu0
        %v429 = vadd.f32 %v360, %v428
        %v430 = vpop.f32.mrf.mxu0
        %431 = vdwg.mxu0
        %v432 = vmul.f32 %v429, 0.01
        %v433 = vmax.f32 %v429, %v432
        %v434 = vld [vmem:[#allocation7] sm:$0xff]
        %v435 = vld [vmem:[#allocation7 + $0x8] sm:$0xff]
        %v436 = vld [vmem:[#allocation7 + $0x10] sm:$0xff]
        %v437 = vld [vmem:[#allocation7 + $0x18] sm:$0xff]
        %v438 = vld [vmem:[#allocation7 + $0x20] sm:$0xff]
        %v439 = vld [vmem:[#allocation7 + $0x28] sm:$0xff]
        %v440 = vld [vmem:[#allocation7 + $0x30] sm:$0xff]
        %v441 = vld [vmem:[#allocation7 + $0x38] sm:$0xff]
        %v442 = vld [vmem:[#allocation7 + $0x40] sm:$0xff]
        %v443 = vld [vmem:[#allocation7 + $0x48] sm:$0xff]
        %v444 = vld [vmem:[#allocation7 + $0x50] sm:$0xff]
        %v445 = vld [vmem:[#allocation7 + $0x58] sm:$0xff]
        %v446 = vld [vmem:[#allocation7 + $0x60] sm:$0xff]
        %v447 = vld [vmem:[#allocation7 + $0x68] sm:$0xff]
        %v448 = vld [vmem:[#allocation7 + $0x70] sm:$0xff]
        %v449 = vld [vmem:[#allocation7 + $0x78] sm:$0xff]
        %v450 = vld [vmem:[%s4] sm:$0x1]
        %v452 = vlaneseq
        %v453 = vshrl.u32 %v452, 7
        %v454 = vsub.s32 0, %v453
        %v455 = vrot.slane %v450, %v454
        %457 = vmatprep.subr.mxu0 0.0
        %458 = vmatpush1.msra.mxu0 %v449
        %459 = vmatprep.subr.mxu0 0.0
        %460 = vmatpush1.msra.mxu0 %v448
        %461 = vmatprep.subr.mxu0 0.0
        %462 = vmatpush1.msra.mxu0 %v447
        %463 = vmatprep.subr.mxu0 0.0
        %464 = vmatpush1.msra.mxu0 %v446
        %465 = vmatprep.subr.mxu0 0.0
        %466 = vmatpush1.msra.mxu0 %v445
        %467 = vmatprep.subr.mxu0 0.0
        %468 = vmatpush1.msra.mxu0 %v444
        %469 = vmatprep.subr.mxu0 0.0
        %470 = vmatpush1.msra.mxu0 %v443
        %471 = vmatprep.subr.mxu0 0.0
        %472 = vmatpush1.msra.mxu0 %v442
        %473 = vmatprep.subr.mxu0 0.0
        %474 = vmatpush1.msra.mxu0 %v441
        %475 = vmatprep.subr.mxu0 0.0
        %476 = vmatpush1.msra.mxu0 %v440
        %477 = vmatprep.subr.mxu0 0.0
        %478 = vmatpush1.msra.mxu0 %v439
        %479 = vmatprep.subr.mxu0 0.0
        %480 = vmatpush1.msra.mxu0 %v438
        %481 = vmatprep.subr.mxu0 0.0
        %482 = vmatpush1.msra.mxu0 %v437
        %483 = vmatprep.subr.mxu0 0.0
        %484 = vmatpush1.msra.mxu0 %v436
        %485 = vmatprep.subr.mxu0 0.0
        %486 = vmatpush1.msra.mxu0 %v435
        %487 = vmatprep.subr.mxu0 0.0
        %488 = vmatpush1.msra.mxu0 %v434
        %489 = vmatprep.subr.mxu0 0.0
        %490 = vmatpush2.msra.mxu0 0.0
        %491 = vmatprep.subr.mxu0 0.0
        %492 = vmatpush2.msra.mxu0 0.0
        %493 = vmatprep.subr.mxu0 0.0
        %494 = vmatpush2.msra.mxu0 0.0
        %495 = vmatprep.subr.mxu0 0.0
        %496 = vmatpush2.msra.mxu0 0.0
        %497 = vmatprep.subr.mxu0 0.0
        %498 = vmatpush2.msra.mxu0 0.0
        %499 = vmatprep.subr.mxu0 0.0
        %500 = vmatpush2.msra.mxu0 0.0
        %501 = vmatprep.subr.mxu0 0.0
        %502 = vmatpush2.msra.mxu0 0.0
        %503 = vmatprep.subr.mxu0 0.0
        %504 = vmatpush2.msra.mxu0 0.0
        %505 = vmatprep.subr.mxu0 0.0
        %506 = vmatpush2.msra.mxu0 0.0
        %507 = vmatprep.subr.mxu0 0.0
        %508 = vmatpush2.msra.mxu0 0.0
        %509 = vmatprep.subr.mxu0 0.0
        %510 = vmatpush2.msra.mxu0 0.0
        %511 = vmatprep.subr.mxu0 0.0
        %512 = vmatpush2.msra.mxu0 0.0
        %513 = vmatprep.subr.mxu0 0.0
        %514 = vmatpush2.msra.mxu0 0.0
        %515 = vmatprep.subr.mxu0 0.0
        %516 = vmatpush2.msra.mxu0 0.0
        %517 = vmatprep.subr.mxu0 0.0
        %518 = vmatpush2.msra.mxu0 0.0
        %519 = vmatprep.subr.mxu0 0.0
        %520 = vmatpush2.msra.mxu0 0.0
        %521 = vmatprep.mubr.f32.mxu0 0.0
        %522 = vmatmul.mubr.f32.gmra.mxu0 %v433
        %v523 = vpop.f32.mrf.mxu0
        %v524 = vadd.f32 %v455, %v523
        %v525 = vpop.f32.mrf.mxu0
        %526 = vdwg.mxu0
        %v527 = vmul.f32 %v524, 0.01
        %v528 = vmax.f32 %v524, %v527
        %v529 = vld [vmem:[#allocation8] sm:$0xff]
        %v530 = vld [vmem:[#allocation8 + $0x8] sm:$0xff]
        %v531 = vld [vmem:[#allocation8 + $0x10] sm:$0xff]
        %v532 = vld [vmem:[#allocation8 + $0x18] sm:$0xff]
        %v533 = vld [vmem:[#allocation8 + $0x20] sm:$0xff]
        %v534 = vld [vmem:[#allocation8 + $0x28] sm:$0xff]
        %v535 = vld [vmem:[#allocation8 + $0x30] sm:$0xff]
        %v536 = vld [vmem:[#allocation8 + $0x38] sm:$0xff]
        %v537 = vld [vmem:[#allocation8 + $0x40] sm:$0xff]
        %v538 = vld [vmem:[#allocation8 + $0x48] sm:$0xff]
        %v539 = vld [vmem:[#allocation8 + $0x50] sm:$0xff]
        %v540 = vld [vmem:[#allocation8 + $0x58] sm:$0xff]
        %v541 = vld [vmem:[#allocation8 + $0x60] sm:$0xff]
        %v542 = vld [vmem:[#allocation8 + $0x68] sm:$0xff]
        %v543 = vld [vmem:[#allocation8 + $0x70] sm:$0xff]
        %v544 = vld [vmem:[#allocation8 + $0x78] sm:$0xff]
        %v545 = vld [vmem:[%s6] sm:$0x1]
        %v547 = vlaneseq
        %v548 = vshrl.u32 %v547, 7
        %v549 = vsub.s32 0, %v548
        %v550 = vrot.slane %v545, %v549
        %552 = vmatprep.subr.mxu0 0.0
        %553 = vmatpush1.msra.mxu0 %v544
        %554 = vmatprep.subr.mxu0 0.0
        %555 = vmatpush1.msra.mxu0 %v543
        %556 = vmatprep.subr.mxu0 0.0
        %557 = vmatpush1.msra.mxu0 %v542
        %558 = vmatprep.subr.mxu0 0.0
        %559 = vmatpush1.msra.mxu0 %v541
        %560 = vmatprep.subr.mxu0 0.0
        %561 = vmatpush1.msra.mxu0 %v540
        %562 = vmatprep.subr.mxu0 0.0
        %563 = vmatpush1.msra.mxu0 %v539
        %564 = vmatprep.subr.mxu0 0.0
        %565 = vmatpush1.msra.mxu0 %v538
        %566 = vmatprep.subr.mxu0 0.0
        %567 = vmatpush1.msra.mxu0 %v537
        %568 = vmatprep.subr.mxu0 0.0
        %569 = vmatpush1.msra.mxu0 %v536
        %570 = vmatprep.subr.mxu0 0.0
        %571 = vmatpush1.msra.mxu0 %v535
        %572 = vmatprep.subr.mxu0 0.0
        %573 = vmatpush1.msra.mxu0 %v534
        %574 = vmatprep.subr.mxu0 0.0
        %575 = vmatpush1.msra.mxu0 %v533
        %576 = vmatprep.subr.mxu0 0.0
        %577 = vmatpush1.msra.mxu0 %v532
        %578 = vmatprep.subr.mxu0 0.0
        %579 = vmatpush1.msra.mxu0 %v531
        %580 = vmatprep.subr.mxu0 0.0
        %581 = vmatpush1.msra.mxu0 %v530
        %582 = vmatprep.subr.mxu0 0.0
        %583 = vmatpush1.msra.mxu0 %v529
        %584 = vmatprep.subr.mxu0 0.0
        %585 = vmatpush2.msra.mxu0 0.0
        %586 = vmatprep.subr.mxu0 0.0
        %587 = vmatpush2.msra.mxu0 0.0
        %588 = vmatprep.subr.mxu0 0.0
        %589 = vmatpush2.msra.mxu0 0.0
        %590 = vmatprep.subr.mxu0 0.0
        %591 = vmatpush2.msra.mxu0 0.0
        %592 = vmatprep.subr.mxu0 0.0
        %593 = vmatpush2.msra.mxu0 0.0
        %594 = vmatprep.subr.mxu0 0.0
        %595 = vmatpush2.msra.mxu0 0.0
        %596 = vmatprep.subr.mxu0 0.0
        %597 = vmatpush2.msra.mxu0 0.0
        %598 = vmatprep.subr.mxu0 0.0
        %599 = vmatpush2.msra.mxu0 0.0
        %600 = vmatprep.subr.mxu0 0.0
        %601 = vmatpush2.msra.mxu0 0.0
        %602 = vmatprep.subr.mxu0 0.0
        %603 = vmatpush2.msra.mxu0 0.0
        %604 = vmatprep.subr.mxu0 0.0
        %605 = vmatpush2.msra.mxu0 0.0
        %606 = vmatprep.subr.mxu0 0.0
        %607 = vmatpush2.msra.mxu0 0.0
        %608 = vmatprep.subr.mxu0 0.0
        %609 = vmatpush2.msra.mxu0 0.0
        %610 = vmatprep.subr.mxu0 0.0
        %611 = vmatpush2.msra.mxu0 0.0
        %612 = vmatprep.subr.mxu0 0.0
        %613 = vmatpush2.msra.mxu0 0.0
        %614 = vmatprep.subr.mxu0 0.0
        %615 = vmatpush2.msra.mxu0 0.0
        %616 = vmatprep.mubr.f32.mxu0 0.0
        %617 = vmatmul.mubr.f32.gmra.mxu0 %v528
        %v618 = vpop.f32.mrf.mxu0
        %v619 = vadd.f32 %v550, %v618
        %v620 = vpop.f32.mrf.mxu0
        %621 = vdwg.mxu0
        %622 = vst [vmem:[%s337] sm:$0xff] %v619
        %s623 = sand.u32 %s186, 1
        %s624 = scalar_lea.sflag [#allocation4], %s623
        %s625 = sand.u32 %s186, 1
        %s626 = smul.addr %s625, 8
        %s627 = scalar_lea.vmem [#allocation10], %s626
        // Predicated region
        $region65: #{tpu_custom_call.1} parent=47 // pred_check
          %p628 = pneg %p196
        $region66: #{tpu_custom_call.1} parent=47 // pred_check_branch
          %630 = sbr.rel (%p628) target = $region68
        $region67: #{tpu_custom_call.1} parent=47 // pred_region
          %s632 = ssub.s32 128, 128
          %633 = vsyncadd %s624, %s632
          %s634 = smul.addr %s26, 128
          %s635 = scalar_lea.hbm %s7, %s634
          %s637 = sshll.u32 %s627, 4
          %s638 = int_to_ptr.vmem [resolvable:$true] %s637
          %640 = dma.vmem_to_hbm [thread:$0]  %s638, 128, %s635, %s624
        $region68: #{tpu_custom_call.1} parent=47 // pred_fallthru
          _
      $region48: #{tpu_custom_call.1} parent=5 // pred_fallthru
        _
      %p641 = scmp.le.s32.totalorder 2, %s21
      // Predicated region
      $region69: #{tpu_custom_call.1} parent=5 // pred_check
        %p642 = pneg %p641
      $region70: #{tpu_custom_call.1} parent=5 // pred_check_branch
        %644 = sbr.rel (%p642) target = $region72
      $region71: #{tpu_custom_call.1} parent=5 // pred_region
        %s645 = ssub.s32 %s21, 2
        // Predicated region
        $region73: #{tpu_custom_call.1} parent=71 // pred_check
          %p646 = pneg %p202
        $region74: #{tpu_custom_call.1} parent=71 // pred_check_branch
          %648 = sbr.rel (%p646) target = $region76
        $region75: #{tpu_custom_call.1} parent=71 // pred_region
          %s649 = sand.u32 %s187, 1
          %s650 = scalar_lea.sflag [#allocation4], %s649
          %s651 = sand.u32 %s187, 1
          %s652 = smul.addr %s651, 8
          %s653 = scalar_lea.vmem [#allocation10], %s652
          %654 = dma.done %s650, 128
        $region76: #{tpu_custom_call.1} parent=71 // pred_fallthru
          _
      $region72: #{tpu_custom_call.1} parent=5 // pred_fallthru
        _
    $region6: #{tpu_custom_call.1} parent=1 // loop_footer
      %s25 = sadd.s32 1, %s21
    $region7: #{tpu_custom_call.1} parent=1 // loop_footer_branch
      %20 = sbr.rel target = $region3
    $region8: #{tpu_custom_call.1} parent=1 // loop_exit
      _
    %655 = vsyncpa [#allocation3], 1
    %s656 = scalar_lea.sflag [#allocation3], 1
    %657 = vsyncpa %s656, 1
    %658 = vsyncpa [#allocation6], 1
    %659 = vsyncpa [#allocation9], 1
    %660 = vsyncpa [#allocation4], 1
    %s661 = scalar_lea.sflag [#allocation4], 1
    %662 = vsyncpa %s661, 1

// kernel: tpu_custom_call.1
$region0: #{tpu_custom_call.1}
  #allocation0 [shape = 'u32[]', space=smem, size = 0x4, offset = 0x4, fixed_abs, tag = 'smem constant byte address 0x4 - core index']
  #allocation1 [shape = 'u32[144,128]{1,0:T(1,128)}', space=vmem, size = 0x12000, scoped, tag = 'internal scratch']
  %s0 = inlined_call_operand.hbm [shape: f32[16,128], index: 0, kind: input, shape index: {}]
  %s1 = inlined_call_operand.hbm [shape: f32[128,128], index: 1, kind: input, shape index: {}]
  %s2 = inlined_call_operand.vmem [shape: f32[1,128], index: 2, kind: input, shape index: {}]
  %s3 = inlined_call_operand.hbm [shape: f32[128,128], index: 3, kind: input, shape index: {}]
  %s4 = inlined_call_operand.vmem [shape: f32[1,128], index: 4, kind: input, shape index: {}]
  %s5 = inlined_call_operand.hbm [shape: f32[128,128], index: 5, kind: input, shape index: {}]
  %s6 = inlined_call_operand.vmem [shape: f32[1,128], index: 6, kind: input, shape index: {}]
  %s7 = inlined_call_operand.hbm [shape: f32[16,128], index: 7, kind: output, shape index: {}]
  %s8 = sld [smem:[#allocation0]]
  $region77: #{tpu_custom_call.1} parent=0
    _
  %s10 = ssub.s32 1, %s8
  %s11 = scalar_select 0, %s10, %s8
  $region1: #{tpu_custom_call.1} parent=0
    #allocation2 [shape = 'u8[8192]{0}', space=vmem, size = 0x2000, scoped, tag = 'input window, operand 0']
    #allocation3 [shape = 's32[2]{0}', space=sflag, size = 0x8, scoped, tag = 'scoped memory for tpu_custom_call.1']
    #allocation4 [shape = 's32[2]{0}', space=sflag, size = 0x8, scoped, tag = 'scoped memory for tpu_custom_call.1']
    #allocation5 [shape = 'u8[65536]{0}', space=vmem, size = 0x10000, scoped, tag = 'input window, operand 1, single buffered']
    #allocation6 [shape = 's32[1]{0}', space=sflag, size = 0x4, scoped, tag = 'scoped memory for tpu_custom_call.1']
    #allocation7 [shape = 'u8[65536]{0}', space=vmem, size = 0x10000, scoped, tag = 'input window, operand 3, single buffered']
    #allocation8 [shape = 'u8[65536]{0}', space=vmem, size = 0x10000, scoped, tag = 'input window, operand 5, single buffered']
    #allocation9 [shape = 's32[1]{0}', space=sflag, size = 0x4, scoped, tag = 'scoped memory for tpu_custom_call.1']
    #allocation10 [shape = 'u8[8192]{0}', space=vmem, size = 0x2000, scoped, tag = 'output window, operand 0']
    %12 = vsyncpa [#allocation3], 0
    %s13 = scalar_lea.sflag [#allocation3], 1
    %14 = vsyncpa %s13, 0
    %15 = vsyncpa [#allocation6], 0
    %16 = vsyncpa [#allocation9], 0
    %17 = vsyncpa [#allocation4], 0
    %s18 = scalar_lea.sflag [#allocation4], 1
    %19 = vsyncpa %s18, 0
    loop: start=0, step=1, limit=4
    $region2: #{tpu_custom_call.1} parent=1 // loop_pre_header
      _
    $region3: #{tpu_custom_call.1} parent=1 // loop_header
      %s21 = sphi 0, %s25
      %p22 = scmp.ge.s32.totalorder %s21, 4
      %s31 = sphi 0, %s33
      %s34 = sphi 0, %s31
      %s35 = sphi 0, %s34
      %s51 = sphi 0, %s35
      %s55 = sphi 0, %s55
      %s57 = sphi 0, %s55
      %s58 = sphi 0, %s57
      %s72 = sphi 0, %s58
      %s76 = sphi 0, %s76
      %s78 = sphi 0, %s76
      %s79 = sphi 0, %s78
      %s93 = sphi 0, %s79
      %s97 = sphi 0, %s97
      %s99 = sphi 0, %s97
      %s100 = sphi 0, %s99
      %s114 = sphi 0, %s100
      %s118 = sphi 0, %s118
      %s120 = sphi 0, %s118
      %s121 = sphi 0, %s120
      %s135 = sphi 0, %s121
      %s139 = sphi 0, %s139
      %s141 = sphi 0, %s139
      %s142 = sphi 0, %s141
      %s156 = sphi 0, %s142
      %s160 = sphi 0, %s160
      %s162 = sphi 0, %s160
      %s163 = sphi 0, %s162
      %s177 = sphi 0, %s163
      %s183 = sphi 0, %s185
      %s186 = sphi 0, %s183
      %s187 = sphi 0, %s186
      %s203 = sphi 0, %s187
    $region4: #{tpu_custom_call.1} parent=1 // loop_header_branch
      %24 = sbr.rel (%p22) target = $region8
    $region5: #{tpu_custom_call.1} parent=1 // loop_body
      %s26 = ssub.s32 %s21, 1
      %s27 = ssub.s32 %s21, 2
      %s28 = sadd.s32 %s21, 1
      %s29 = ssub.s32 %s21, %s28
      %p30 = scmp.eq.s32.totalorder %s29, 0
      %s32 = sadd.s32 %s31, 1
      %s33 = scalar_select %p30, %s31, %s32
      %p36 = pneg %p30
      %p37 = scmp.eq.s32.totalorder %s21, 1
      %p38 = por %p36, %p37
      %p39 = scmp.ne.s32.totalorder %s31, %s34
      %p40 = scmp.eq.s32.totalorder %s21, 0
      %p41 = por %p39, %p40
      %p42 = scmp.ne.s32.totalorder %s31, %s34
      %p43 = scmp.eq.s32.totalorder %s26, 1
      %p44 = por %p42, %p43
      %p45 = scmp.ne.s32.totalorder %s34, %s35
      %p46 = scmp.eq.s32.totalorder %s26, 0
      %p47 = por %p45, %p46
      %p48 = scmp.ne.s32.totalorder %s34, %s35
      %p49 = scmp.eq.s32.totalorder %s27, 1
      %p50 = por %p48, %p49
      %p52 = scmp.ne.s32.totalorder %s35, %s51
      %p53 = scmp.eq.s32.totalorder %s27, 0
      %p54 = por %p52, %p53
      %s56 = sadd.s32 %s55, 1
      %p59 = scmp.eq.s32.totalorder %s21, 1
      %p60 = scmp.ne.s32.totalorder %s55, %s57
      %p61 = scmp.eq.s32.totalorder %s21, 0
      %p62 = por %p60, %p61
      %p63 = scmp.ne.s32.totalorder %s55, %s57
      %p64 = scmp.eq.s32.totalorder %s26, 1
      %p65 = por %p63, %p64
      %p66 = scmp.ne.s32.totalorder %s57, %s58
      %p67 = scmp.eq.s32.totalorder %s26, 0
      %p68 = por %p66, %p67
      %p69 = scmp.ne.s32.totalorder %s57, %s58
      %p70 = scmp.eq.s32.totalorder %s27, 1
      %p71 = por %p69, %p70
      %p73 = scmp.ne.s32.totalorder %s58, %s72
      %p74 = scmp.eq.s32.totalorder %s27, 0
      %p75 = por %p73, %p74
      %s77 = sadd.s32 %s76, 1
      %p80 = scmp.eq.s32.totalorder %s21, 1
      %p81 = scmp.ne.s32.totalorder %s76, %s78
      %p82 = scmp.eq.s32.totalorder %s21, 0
      %p83 = por %p81, %p82
      %p84 = scmp.ne.s32.totalorder %s76, %s78
      %p85 = scmp.eq.s32.totalorder %s26, 1
      %p86 = por %p84, %p85
      %p87 = scmp.ne.s32.totalorder %s78, %s79
      %p88 = scmp.eq.s32.totalorder %s26, 0
      %p89 = por %p87, %p88
      %p90 = scmp.ne.s32.totalorder %s78, %s79
      %p91 = scmp.eq.s32.totalorder %s27, 1
      %p92 = por %p90, %p91
      %p94 = scmp.ne.s32.totalorder %s79, %s93
      %p95 = scmp.eq.s32.totalorder %s27, 0
      %p96 = por %p94, %p95
      %s98 = sadd.s32 %s97, 1
      %p101 = scmp.eq.s32.totalorder %s21, 1
      %p102 = scmp.ne.s32.totalorder %s97, %s99
      %p103 = scmp.eq.s32.totalorder %s21, 0
      %p104 = por %p102, %p103
      %p105 = scmp.ne.s32.totalorder %s97, %s99
      %p106 = scmp.eq.s32.totalorder %s26, 1
      %p107 = por %p105, %p106
      %p108 = scmp.ne.s32.totalorder %s99, %s100
      %p109 = scmp.eq.s32.totalorder %s26, 0
      %p110 = por %p108, %p109
      %p111 = scmp.ne.s32.totalorder %s99, %s100
      %p112 = scmp.eq.s32.totalorder %s27, 1
      %p113 = por %p111, %p112
      %p115 = scmp.ne.s32.totalorder %s100, %s114
      %p116 = scmp.eq.s32.totalorder %s27, 0
      %p117 = por %p115, %p116
      %s119 = sadd.s32 %s118, 1
      %p122 = scmp.eq.s32.totalorder %s21, 1
      %p123 = scmp.ne.s32.totalorder %s118, %s120
      %p124 = scmp.eq.s32.totalorder %s21, 0
      %p125 = por %p123, %p124
      %p126 = scmp.ne.s32.totalorder %s118, %s120
      %p127 = scmp.eq.s32.totalorder %s26, 1
      %p128 = por %p126, %p127
      %p129 = scmp.ne.s32.totalorder %s120, %s121
      %p130 = scmp.eq.s32.totalorder %s26, 0
      %p131 = por %p129, %p130
      %p132 = scmp.ne.s32.totalorder %s120, %s121
      %p133 = scmp.eq.s32.totalorder %s27, 1
      %p134 = por %p132, %p133
      %p136 = scmp.ne.s32.totalorder %s121, %s135
      %p137 = scmp.eq.s32.totalorder %s27, 0
      %p138 = por %p136, %p137
      %s140 = sadd.s32 %s139, 1
      %p143 = scmp.eq.s32.totalorder %s21, 1
      %p144 = scmp.ne.s32.totalorder %s139, %s141
      %p145 = scmp.eq.s32.totalorder %s21, 0
      %p146 = por %p144, %p145
      %p147 = scmp.ne.s32.totalorder %s139, %s141
      %p148 = scmp.eq.s32.totalorder %s26, 1
      %p149 = por %p147, %p148
      %p150 = scmp.ne.s32.totalorder %s141, %s142
      %p151 = scmp.eq.s32.totalorder %s26, 0
      %p152 = por %p150, %p151
      %p153 = scmp.ne.s32.totalorder %s141, %s142
      %p154 = scmp.eq.s32.totalorder %s27, 1
      %p155 = por %p153, %p154
      %p157 = scmp.ne.s32.totalorder %s142, %s156
      %p158 = scmp.eq.s32.totalorder %s27, 0
      %p159 = por %p157, %p158
      %s161 = sadd.s32 %s160, 1
      %p164 = scmp.eq.s32.totalorder %s21, 1
      %p165 = scmp.ne.s32.totalorder %s160, %s162
      %p166 = scmp.eq.s32.totalorder %s21, 0
      %p167 = por %p165, %p166
      %p168 = scmp.ne.s32.totalorder %s160, %s162
      %p169 = scmp.eq.s32.totalorder %s26, 1
      %p170 = por %p168, %p169
      %p171 = scmp.ne.s32.totalorder %s162, %s163
      %p172 = scmp.eq.s32.totalorder %s26, 0
      %p173 = por %p171, %p172
      %p174 = scmp.ne.s32.totalorder %s162, %s163
      %p175 = scmp.eq.s32.totalorder %s27, 1
      %p176 = por %p174, %p175
      %p178 = scmp.ne.s32.totalorder %s163, %s177
      %p179 = scmp.eq.s32.totalorder %s27, 0
      %p180 = por %p178, %p179
      %s181 = ssub.s32 %s21, %s28
      %p182 = scmp.eq.s32.totalorder %s181, 0
      %s184 = sadd.s32 %s183, 1
      %s185 = scalar_select %p182, %s183, %s184
      %p188 = pneg %p182
      %p189 = scmp.eq.s32.totalorder %s21, 1
      %p190 = por %p188, %p189
      %p191 = scmp.ne.s32.totalorder %s183, %s186
      %p192 = scmp.eq.s32.totalorder %s21, 0
      %p193 = por %p191, %p192
      %p194 = scmp.ne.s32.totalorder %s183, %s186
      %p195 = scmp.eq.s32.totalorder %s26, 1
      %p196 = por %p194, %p195
      %p197 = scmp.ne.s32.totalorder %s186, %s187
      %p198 = scmp.eq.s32.totalorder %s26, 0
      %p199 = por %p197, %p198
      %p200 = scmp.ne.s32.totalorder %s186, %s187
      %p201 = scmp.eq.s32.totalorder %s27, 1
      %p202 = por %p200, %p201
      %p204 = scmp.ne.s32.totalorder %s187, %s203
      %p205 = scmp.eq.s32.totalorder %s27, 0
      %p206 = por %p204, %p205
      %p207 = scmp.le.s32.totalorder 1, %s21
      %p208 = scmp.lt.s32.totalorder %s21, 3
      %p209 = pnand %p207, %p208
      %p210 = pneg %p209
      // Predicated region
      $region9: #{tpu_custom_call.1} parent=5 // pred_check
        _
      $region10: #{tpu_custom_call.1} parent=5 // pred_check_branch
        %212 = sbr.rel (%p209) target = $region12
      $region11: #{tpu_custom_call.1} parent=5 // pred_region
        %s213 = ssub.s32 %s21, 1
        // Predicated region
        $region13: #{tpu_custom_call.1} parent=11 // pred_check
          %p214 = pneg %p68
        $region14: #{tpu_custom_call.1} parent=11 // pred_check_branch
          %216 = sbr.rel (%p214) target = $region16
        $region15: #{tpu_custom_call.1} parent=11 // pred_region
          %s218 = ssub.s32 2048, 2048
          %219 = vsyncadd [#allocation6], %s218
          %s220 = sshll.u32 [#allocation5], 4
          %s221 = int_to_ptr.vmem [resolvable:$true] %s220
          %226 = dma.hbm_to_vmem [thread:$0]  %s1, 2048, %s221, [#allocation6], 128, 128, 8
        $region16: #{tpu_custom_call.1} parent=11 // pred_fallthru
          _
        // Predicated region
        $region17: #{tpu_custom_call.1} parent=11 // pred_check
          %p227 = pneg %p89
        $region18: #{tpu_custom_call.1} parent=11 // pred_check_branch
          %229 = sbr.rel (%p227) target = $region20
        $region19: #{tpu_custom_call.1} parent=11 // pred_region
          _
        $region20: #{tpu_custom_call.1} parent=11 // pred_fallthru
          _
        // Predicated region
        $region21: #{tpu_custom_call.1} parent=11 // pred_check
          %p230 = pneg %p110
        $region22: #{tpu_custom_call.1} parent=11 // pred_check_branch
          %232 = sbr.rel (%p230) target = $region24
        $region23: #{tpu_custom_call.1} parent=11 // pred_region
          %s234 = ssub.s32 2048, 2048
          %235 = vsyncadd [#allocation6], %s234
          %s236 = sshll.u32 [#allocation7], 4
          %s237 = int_to_ptr.vmem [resolvable:$true] %s236
          %242 = dma.hbm_to_vmem [thread:$0]  %s3, 2048, %s237, [#allocation6], 128, 128, 8
        $region24: #{tpu_custom_call.1} parent=11 // pred_fallthru
          _
        // Predicated region
        $region25: #{tpu_custom_call.1} parent=11 // pred_check
          %p243 = pneg %p131
        $region26: #{tpu_custom_call.1} parent=11 // pred_check_branch
          %245 = sbr.rel (%p243) target = $region28
        $region27: #{tpu_custom_call.1} parent=11 // pred_region
          _
        $region28: #{tpu_custom_call.1} parent=11 // pred_fallthru
          _
        // Predicated region
        $region29: #{tpu_custom_call.1} parent=11 // pred_check
          %p246 = pneg %p152
        $region30: #{tpu_custom_call.1} parent=11 // pred_check_branch
          %248 = sbr.rel (%p246) target = $region32
        $region31: #{tpu_custom_call.1} parent=11 // pred_region
          %s250 = ssub.s32 2048, 2048
          %251 = vsyncadd [#allocation9], %s250
          %s252 = sshll.u32 [#allocation8], 4
          %s253 = int_to_ptr.vmem [resolvable:$true] %s252
          %258 = dma.hbm_to_vmem [thread:$0]  %s5, 2048, %s253, [#allocation9], 128, 128, 8
        $region32: #{tpu_custom_call.1} parent=11 // pred_fallthru
          _
        // Predicated region
        $region33: #{tpu_custom_call.1} parent=11 // pred_check
          %p259 = pneg %p173
        $region34: #{tpu_custom_call.1} parent=11 // pred_check_branch
          %261 = sbr.rel (%p259) target = $region36
        $region35: #{tpu_custom_call.1} parent=11 // pred_region
          _
        $region36: #{tpu_custom_call.1} parent=11 // pred_fallthru
          _
      $region12: #{tpu_custom_call.1} parent=5 // pred_fallthru
        _
      %p262 = scmp.lt.s32.totalorder %s21, 2
      // Predicated region
      $region37: #{tpu_custom_call.1} parent=5 // pred_check
        %p263 = pneg %p262
      $region38: #{tpu_custom_call.1} parent=5 // pred_check_branch
        %265 = sbr.rel (%p263) target = $region40
      $region39: #{tpu_custom_call.1} parent=5 // pred_region
        // Predicated region
        $region41: #{tpu_custom_call.1} parent=39 // pred_check
          %p266 = pneg %p41
        $region42: #{tpu_custom_call.1} parent=39 // pred_check_branch
          %268 = sbr.rel (%p266) target = $region44
        $region43: #{tpu_custom_call.1} parent=39 // pred_region
          %s269 = sand.u32 %s31, 1
          %s270 = scalar_lea.sflag [#allocation3], %s269
          %s271 = sand.u32 %s31, 1
          %s272 = smul.addr %s271, 8
          %s273 = scalar_lea.vmem [#allocation2], %s272
          %s275 = ssub.s32 128, 128
          %276 = vsyncadd %s270, %s275
          %s277 = smul.addr %s21, 128
          %s278 = scalar_lea.hbm %s0, %s277
          %s280 = sshll.u32 %s273, 4
          %s281 = int_to_ptr.vmem [resolvable:$true] %s280
          %283 = dma.hbm_to_vmem [thread:$0]  %s278, 128, %s281, %s270
        $region44: #{tpu_custom_call.1} parent=39 // pred_fallthru
          _
      $region40: #{tpu_custom_call.1} parent=5 // pred_fallthru
        _
      %p284 = scmp.le.s32.totalorder 1, %s21
      %p285 = scmp.lt.s32.totalorder %s21, 3
      %p286 = pnand %p284, %p285
      %p287 = pneg %p286
      // Predicated region
      $region45: #{tpu_custom_call.1} parent=5 // pred_check
        _
      $region46: #{tpu_custom_call.1} parent=5 // pred_check_branch
        %289 = sbr.rel (%p286) target = $region48
      $region47: #{tpu_custom_call.1} parent=5 // pred_region
        %s290 = ssub.s32 %s21, 1
        %s291 = sand.u32 %s34, 1
        %s292 = scalar_lea.sflag [#allocation3], %s291
        %s293 = sand.u32 %s34, 1
        %s294 = smul.addr %s293, 8
        %s295 = scalar_lea.vmem [#allocation2], %s294
        // Predicated region
        $region49: #{tpu_custom_call.1} parent=47 // pred_check
          %p296 = pneg %p47
        $region50: #{tpu_custom_call.1} parent=47 // pred_check_branch
          %298 = sbr.rel (%p296) target = $region52
        $region51: #{tpu_custom_call.1} parent=47 // pred_region
          %299 = dma.done %s292, 128
        $region52: #{tpu_custom_call.1} parent=47 // pred_fallthru
          _
        // Predicated region
        $region53: #{tpu_custom_call.1} parent=47 // pred_check
          %p300 = pneg %p68
        $region54: #{tpu_custom_call.1} parent=47 // pred_check_branch
          %302 = sbr.rel (%p300) target = $region56
        $region55: #{tpu_custom_call.1} parent=47 // pred_region
          %303 = dma.done [#allocation6], 2048
        $region56: #{tpu_custom_call.1} parent=47 // pred_fallthru
          _
        // Predicated region
        $region57: #{tpu_custom_call.1} parent=47 // pred_check
          %p304 = pneg %p110
        $region58: #{tpu_custom_call.1} parent=47 // pred_check_branch
          %306 = sbr.rel (%p304) target = $region60
        $region59: #{tpu_custom_call.1} parent=47 // pred_region
          %307 = dma.done [#allocation6], 2048
        $region60: #{tpu_custom_call.1} parent=47 // pred_fallthru
          _
        // Predicated region
        $region61: #{tpu_custom_call.1} parent=47 // pred_check
          %p308 = pneg %p152
        $region62: #{tpu_custom_call.1} parent=47 // pred_check_branch
          %310 = sbr.rel (%p308) target = $region64
        $region63: #{tpu_custom_call.1} parent=47 // pred_region
          %311 = dma.done [#allocation9], 2048
        $region64: #{tpu_custom_call.1} parent=47 // pred_fallthru
          _
        %s312 = sand.u32 %s34, 1
        %s313 = scalar_lea.sflag [#allocation3], %s312
        %s314 = sand.u32 %s34, 1
        %s315 = smul.addr %s314, 8
        %s316 = scalar_lea.vmem [#allocation2], %s315
        %p317 = pneg %p47
        %p318 = pneg %p44
        %p319 = pneg %p68
        %p320 = pneg %p65
        %p321 = pneg %p89
        %p322 = pneg %p86
        %p323 = pneg %p110
        %p324 = pneg %p107
        %p325 = pneg %p131
        %p326 = pneg %p128
        %p327 = pneg %p152
        %p328 = pneg %p149
        %p329 = pneg %p173
        %p330 = pneg %p170
        %p331 = pneg %p199
        %p332 = pneg %p196
        %s333 = sand.u32 %s186, 1
        %s334 = scalar_lea.sflag [#allocation4], %s333
        %s335 = sand.u32 %s186, 1
        %s336 = smul.addr %s335, 8
        %s337 = scalar_lea.vmem [#allocation10], %s336
        %v338 = vld [vmem:[%s295] sm:$0xff]
        %v339 = vld [vmem:[#allocation5] sm:$0xff]
        %v340 = vld [vmem:[#allocation5 + $0x8] sm:$0xff]
        %v341 = vld [vmem:[#allocation5 + $0x10] sm:$0xff]
        %v342 = vld [vmem:[#allocation5 + $0x18] sm:$0xff]
        %v343 = vld [vmem:[#allocation5 + $0x20] sm:$0xff]
        %v344 = vld [vmem:[#allocation5 + $0x28] sm:$0xff]
        %v345 = vld [vmem:[#allocation5 + $0x30] sm:$0xff]
        %v346 = vld [vmem:[#allocation5 + $0x38] sm:$0xff]
        %v347 = vld [vmem:[#allocation5 + $0x40] sm:$0xff]
        %v348 = vld [vmem:[#allocation5 + $0x48] sm:$0xff]
        %v349 = vld [vmem:[#allocation5 + $0x50] sm:$0xff]
        %v350 = vld [vmem:[#allocation5 + $0x58] sm:$0xff]
        %v351 = vld [vmem:[#allocation5 + $0x60] sm:$0xff]
        %v352 = vld [vmem:[#allocation5 + $0x68] sm:$0xff]
        %v353 = vld [vmem:[#allocation5 + $0x70] sm:$0xff]
        %v354 = vld [vmem:[#allocation5 + $0x78] sm:$0xff]
        %v355 = vld [vmem:[%s2] sm:$0x1]
        %v357 = vlaneseq
        %v358 = vshrl.u32 %v357, 7
        %v359 = vsub.s32 0, %v358
        %v360 = vrot.slane %v355, %v359
        %362 = vmatprep.subr.mxu0 0.0
        %363 = vmatpush1.msra.mxu0 %v354
        %364 = vmatprep.subr.mxu0 0.0
        %365 = vmatpush1.msra.mxu0 %v353
        %366 = vmatprep.subr.mxu0 0.0
        %367 = vmatpush1.msra.mxu0 %v352
        %368 = vmatprep.subr.mxu0 0.0
        %369 = vmatpush1.msra.mxu0 %v351
        %370 = vmatprep.subr.mxu0 0.0
        %371 = vmatpush1.msra.mxu0 %v350
        %372 = vmatprep.subr.mxu0 0.0
        %373 = vmatpush1.msra.mxu0 %v349
        %374 = vmatprep.subr.mxu0 0.0
        %375 = vmatpush1.msra.mxu0 %v348
        %376 = vmatprep.subr.mxu0 0.0
        %377 = vmatpush1.msra.mxu0 %v347
        %378 = vmatprep.subr.mxu0 0.0
        %379 = vmatpush1.msra.mxu0 %v346
        %380 = vmatprep.subr.mxu0 0.0
        %381 = vmatpush1.msra.mxu0 %v345
        %382 = vmatprep.subr.mxu0 0.0
        %383 = vmatpush1.msra.mxu0 %v344
        %384 = vmatprep.subr.mxu0 0.0
        %385 = vmatpush1.msra.mxu0 %v343
        %386 = vmatprep.subr.mxu0 0.0
        %387 = vmatpush1.msra.mxu0 %v342
        %388 = vmatprep.subr.mxu0 0.0
        %389 = vmatpush1.msra.mxu0 %v341
        %390 = vmatprep.subr.mxu0 0.0
        %391 = vmatpush1.msra.mxu0 %v340
        %392 = vmatprep.subr.mxu0 0.0
        %393 = vmatpush1.msra.mxu0 %v339
        %394 = vmatprep.subr.mxu0 0.0
        %395 = vmatpush2.msra.mxu0 0.0
        %396 = vmatprep.subr.mxu0 0.0
        %397 = vmatpush2.msra.mxu0 0.0
        %398 = vmatprep.subr.mxu0 0.0
        %399 = vmatpush2.msra.mxu0 0.0
        %400 = vmatprep.subr.mxu0 0.0
        %401 = vmatpush2.msra.mxu0 0.0
        %402 = vmatprep.subr.mxu0 0.0
        %403 = vmatpush2.msra.mxu0 0.0
        %404 = vmatprep.subr.mxu0 0.0
        %405 = vmatpush2.msra.mxu0 0.0
        %406 = vmatprep.subr.mxu0 0.0
        %407 = vmatpush2.msra.mxu0 0.0
        %408 = vmatprep.subr.mxu0 0.0
        %409 = vmatpush2.msra.mxu0 0.0
        %410 = vmatprep.subr.mxu0 0.0
        %411 = vmatpush2.msra.mxu0 0.0
        %412 = vmatprep.subr.mxu0 0.0
        %413 = vmatpush2.msra.mxu0 0.0
        %414 = vmatprep.subr.mxu0 0.0
        %415 = vmatpush2.msra.mxu0 0.0
        %416 = vmatprep.subr.mxu0 0.0
        %417 = vmatpush2.msra.mxu0 0.0
        %418 = vmatprep.subr.mxu0 0.0
        %419 = vmatpush2.msra.mxu0 0.0
        %420 = vmatprep.subr.mxu0 0.0
        %421 = vmatpush2.msra.mxu0 0.0
        %422 = vmatprep.subr.mxu0 0.0
        %423 = vmatpush2.msra.mxu0 0.0
        %424 = vmatprep.subr.mxu0 0.0
        %425 = vmatpush2.msra.mxu0 0.0
        %426 = vmatprep.mubr.f32.mxu0 0.0
        %427 = vmatmul.mubr.f32.gmra.mxu0 %v338
        %v428 = vpop.f32.mrf.mxu0
        %v429 = vadd.f32 %v360, %v428
        %v430 = vpop.f32.mrf.mxu0
        %431 = vdwg.mxu0
        %v432 = vmul.f32 %v429, 0.01
        %v433 = vmax.f32 %v429, %v432
        %v434 = vld [vmem:[#allocation7] sm:$0xff]
        %v435 = vld [vmem:[#allocation7 + $0x8] sm:$0xff]
        %v436 = vld [vmem:[#allocation7 + $0x10] sm:$0xff]
        %v437 = vld [vmem:[#allocation7 + $0x18] sm:$0xff]
        %v438 = vld [vmem:[#allocation7 + $0x20] sm:$0xff]
        %v439 = vld [vmem:[#allocation7 + $0x28] sm:$0xff]
        %v440 = vld [vmem:[#allocation7 + $0x30] sm:$0xff]
        %v441 = vld [vmem:[#allocation7 + $0x38] sm:$0xff]
        %v442 = vld [vmem:[#allocation7 + $0x40] sm:$0xff]
        %v443 = vld [vmem:[#allocation7 + $0x48] sm:$0xff]
        %v444 = vld [vmem:[#allocation7 + $0x50] sm:$0xff]
        %v445 = vld [vmem:[#allocation7 + $0x58] sm:$0xff]
        %v446 = vld [vmem:[#allocation7 + $0x60] sm:$0xff]
        %v447 = vld [vmem:[#allocation7 + $0x68] sm:$0xff]
        %v448 = vld [vmem:[#allocation7 + $0x70] sm:$0xff]
        %v449 = vld [vmem:[#allocation7 + $0x78] sm:$0xff]
        %v450 = vld [vmem:[%s4] sm:$0x1]
        %v452 = vlaneseq
        %v453 = vshrl.u32 %v452, 7
        %v454 = vsub.s32 0, %v453
        %v455 = vrot.slane %v450, %v454
        %457 = vmatprep.subr.mxu0 0.0
        %458 = vmatpush1.msra.mxu0 %v449
        %459 = vmatprep.subr.mxu0 0.0
        %460 = vmatpush1.msra.mxu0 %v448
        %461 = vmatprep.subr.mxu0 0.0
        %462 = vmatpush1.msra.mxu0 %v447
        %463 = vmatprep.subr.mxu0 0.0
        %464 = vmatpush1.msra.mxu0 %v446
        %465 = vmatprep.subr.mxu0 0.0
        %466 = vmatpush1.msra.mxu0 %v445
        %467 = vmatprep.subr.mxu0 0.0
        %468 = vmatpush1.msra.mxu0 %v444
        %469 = vmatprep.subr.mxu0 0.0
        %470 = vmatpush1.msra.mxu0 %v443
        %471 = vmatprep.subr.mxu0 0.0
        %472 = vmatpush1.msra.mxu0 %v442
        %473 = vmatprep.subr.mxu0 0.0
        %474 = vmatpush1.msra.mxu0 %v441
        %475 = vmatprep.subr.mxu0 0.0
        %476 = vmatpush1.msra.mxu0 %v440
        %477 = vmatprep.subr.mxu0 0.0
        %478 = vmatpush1.msra.mxu0 %v439
        %479 = vmatprep.subr.mxu0 0.0
        %480 = vmatpush1.msra.mxu0 %v438
        %481 = vmatprep.subr.mxu0 0.0
        %482 = vmatpush1.msra.mxu0 %v437
        %483 = vmatprep.subr.mxu0 0.0
        %484 = vmatpush1.msra.mxu0 %v436
        %485 = vmatprep.subr.mxu0 0.0
        %486 = vmatpush1.msra.mxu0 %v435
        %487 = vmatprep.subr.mxu0 0.0
        %488 = vmatpush1.msra.mxu0 %v434
        %489 = vmatprep.subr.mxu0 0.0
        %490 = vmatpush2.msra.mxu0 0.0
        %491 = vmatprep.subr.mxu0 0.0
        %492 = vmatpush2.msra.mxu0 0.0
        %493 = vmatprep.subr.mxu0 0.0
        %494 = vmatpush2.msra.mxu0 0.0
        %495 = vmatprep.subr.mxu0 0.0
        %496 = vmatpush2.msra.mxu0 0.0
        %497 = vmatprep.subr.mxu0 0.0
        %498 = vmatpush2.msra.mxu0 0.0
        %499 = vmatprep.subr.mxu0 0.0
        %500 = vmatpush2.msra.mxu0 0.0
        %501 = vmatprep.subr.mxu0 0.0
        %502 = vmatpush2.msra.mxu0 0.0
        %503 = vmatprep.subr.mxu0 0.0
        %504 = vmatpush2.msra.mxu0 0.0
        %505 = vmatprep.subr.mxu0 0.0
        %506 = vmatpush2.msra.mxu0 0.0
        %507 = vmatprep.subr.mxu0 0.0
        %508 = vmatpush2.msra.mxu0 0.0
        %509 = vmatprep.subr.mxu0 0.0
        %510 = vmatpush2.msra.mxu0 0.0
        %511 = vmatprep.subr.mxu0 0.0
        %512 = vmatpush2.msra.mxu0 0.0
        %513 = vmatprep.subr.mxu0 0.0
        %514 = vmatpush2.msra.mxu0 0.0
        %515 = vmatprep.subr.mxu0 0.0
        %516 = vmatpush2.msra.mxu0 0.0
        %517 = vmatprep.subr.mxu0 0.0
        %518 = vmatpush2.msra.mxu0 0.0
        %519 = vmatprep.subr.mxu0 0.0
        %520 = vmatpush2.msra.mxu0 0.0
        %521 = vmatprep.mubr.f32.mxu0 0.0
        %522 = vmatmul.mubr.f32.gmra.mxu0 %v433
        %v523 = vpop.f32.mrf.mxu0
        %v524 = vadd.f32 %v455, %v523
        %v525 = vpop.f32.mrf.mxu0
        %526 = vdwg.mxu0
        %v527 = vmul.f32 %v524, 0.01
        %v528 = vmax.f32 %v524, %v527
        %v529 = vld [vmem:[#allocation8] sm:$0xff]
        %v530 = vld [vmem:[#allocation8 + $0x8] sm:$0xff]
        %v531 = vld [vmem:[#allocation8 + $0x10] sm:$0xff]
        %v532 = vld [vmem:[#allocation8 + $0x18] sm:$0xff]
        %v533 = vld [vmem:[#allocation8 + $0x20] sm:$0xff]
        %v534 = vld [vmem:[#allocation8 + $0x28] sm:$0xff]
        %v535 = vld [vmem:[#allocation8 + $0x30] sm:$0xff]
        %v536 = vld [vmem:[#allocation8 + $0x38] sm:$0xff]
        %v537 = vld [vmem:[#allocation8 + $0x40] sm:$0xff]
        %v538 = vld [vmem:[#allocation8 + $0x48] sm:$0xff]
        %v539 = vld [vmem:[#allocation8 + $0x50] sm:$0xff]
        %v540 = vld [vmem:[#allocation8 + $0x58] sm:$0xff]
        %v541 = vld [vmem:[#allocation8 + $0x60] sm:$0xff]
        %v542 = vld [vmem:[#allocation8 + $0x68] sm:$0xff]
        %v543 = vld [vmem:[#allocation8 + $0x70] sm:$0xff]
        %v544 = vld [vmem:[#allocation8 + $0x78] sm:$0xff]
        %v545 = vld [vmem:[%s6] sm:$0x1]
        %v547 = vlaneseq
        %v548 = vshrl.u32 %v547, 7
        %v549 = vsub.s32 0, %v548
        %v550 = vrot.slane %v545, %v549
        %552 = vmatprep.subr.mxu0 0.0
        %553 = vmatpush1.msra.mxu0 %v544
        %554 = vmatprep.subr.mxu0 0.0
        %555 = vmatpush1.msra.mxu0 %v543
        %556 = vmatprep.subr.mxu0 0.0
        %557 = vmatpush1.msra.mxu0 %v542
        %558 = vmatprep.subr.mxu0 0.0
        %559 = vmatpush1.msra.mxu0 %v541
        %560 = vmatprep.subr.mxu0 0.0
        %561 = vmatpush1.msra.mxu0 %v540
        %562 = vmatprep.subr.mxu0 0.0
        %563 = vmatpush1.msra.mxu0 %v539
        %564 = vmatprep.subr.mxu0 0.0
        %565 = vmatpush1.msra.mxu0 %v538
        %566 = vmatprep.subr.mxu0 0.0
        %567 = vmatpush1.msra.mxu0 %v537
        %568 = vmatprep.subr.mxu0 0.0
        %569 = vmatpush1.msra.mxu0 %v536
        %570 = vmatprep.subr.mxu0 0.0
        %571 = vmatpush1.msra.mxu0 %v535
        %572 = vmatprep.subr.mxu0 0.0
        %573 = vmatpush1.msra.mxu0 %v534
        %574 = vmatprep.subr.mxu0 0.0
        %575 = vmatpush1.msra.mxu0 %v533
        %576 = vmatprep.subr.mxu0 0.0
        %577 = vmatpush1.msra.mxu0 %v532
        %578 = vmatprep.subr.mxu0 0.0
        %579 = vmatpush1.msra.mxu0 %v531
        %580 = vmatprep.subr.mxu0 0.0
        %581 = vmatpush1.msra.mxu0 %v530
        %582 = vmatprep.subr.mxu0 0.0
        %583 = vmatpush1.msra.mxu0 %v529
        %584 = vmatprep.subr.mxu0 0.0
        %585 = vmatpush2.msra.mxu0 0.0
        %586 = vmatprep.subr.mxu0 0.0
        %587 = vmatpush2.msra.mxu0 0.0
        %588 = vmatprep.subr.mxu0 0.0
        %589 = vmatpush2.msra.mxu0 0.0
        %590 = vmatprep.subr.mxu0 0.0
        %591 = vmatpush2.msra.mxu0 0.0
        %592 = vmatprep.subr.mxu0 0.0
        %593 = vmatpush2.msra.mxu0 0.0
        %594 = vmatprep.subr.mxu0 0.0
        %595 = vmatpush2.msra.mxu0 0.0
        %596 = vmatprep.subr.mxu0 0.0
        %597 = vmatpush2.msra.mxu0 0.0
        %598 = vmatprep.subr.mxu0 0.0
        %599 = vmatpush2.msra.mxu0 0.0
        %600 = vmatprep.subr.mxu0 0.0
        %601 = vmatpush2.msra.mxu0 0.0
        %602 = vmatprep.subr.mxu0 0.0
        %603 = vmatpush2.msra.mxu0 0.0
        %604 = vmatprep.subr.mxu0 0.0
        %605 = vmatpush2.msra.mxu0 0.0
        %606 = vmatprep.subr.mxu0 0.0
        %607 = vmatpush2.msra.mxu0 0.0
        %608 = vmatprep.subr.mxu0 0.0
        %609 = vmatpush2.msra.mxu0 0.0
        %610 = vmatprep.subr.mxu0 0.0
        %611 = vmatpush2.msra.mxu0 0.0
        %612 = vmatprep.subr.mxu0 0.0
        %613 = vmatpush2.msra.mxu0 0.0
        %614 = vmatprep.subr.mxu0 0.0
        %615 = vmatpush2.msra.mxu0 0.0
        %616 = vmatprep.mubr.f32.mxu0 0.0
        %617 = vmatmul.mubr.f32.gmra.mxu0 %v528
        %v618 = vpop.f32.mrf.mxu0
        %v619 = vadd.f32 %v550, %v618
        %v620 = vpop.f32.mrf.mxu0
        %621 = vdwg.mxu0
        %622 = vst [vmem:[%s337] sm:$0xff] %v619
        %s623 = sand.u32 %s186, 1
        %s624 = scalar_lea.sflag [#allocation4], %s623
        %s625 = sand.u32 %s186, 1
        %s626 = smul.addr %s625, 8
        %s627 = scalar_lea.vmem [#allocation10], %s626
        // Predicated region
        $region65: #{tpu_custom_call.1} parent=47 // pred_check
          %p628 = pneg %p196
        $region66: #{tpu_custom_call.1} parent=47 // pred_check_branch
          %630 = sbr.rel (%p628) target = $region68
        $region67: #{tpu_custom_call.1} parent=47 // pred_region
          %s632 = ssub.s32 128, 128
          %633 = vsyncadd %s624, %s632
          %s634 = smul.addr %s26, 128
          %s635 = scalar_lea.hbm %s7, %s634
          %s637 = sshll.u32 %s627, 4
          %s638 = int_to_ptr.vmem [resolvable:$true] %s637
          %640 = dma.vmem_to_hbm [thread:$0]  %s638, 128, %s635, %s624
        $region68: #{tpu_custom_call.1} parent=47 // pred_fallthru
          _
      $region48: #{tpu_custom_call.1} parent=5 // pred_fallthru
        _
      %p641 = scmp.le.s32.totalorder 2, %s21
      // Predicated region
      $region69: #{tpu_custom_call.1} parent=5 // pred_check
        %p642 = pneg %p641
      $region70: #{tpu_custom_call.1} parent=5 // pred_check_branch
        %644 = sbr.rel (%p642) target = $region72
      $region71: #{tpu_custom_call.1} parent=5 // pred_region
        %s645 = ssub.s32 %s21, 2
        // Predicated region
        $region73: #{tpu_custom_call.1} parent=71 // pred_check
          %p646 = pneg %p202
        $region74: #{tpu_custom_call.1} parent=71 // pred_check_branch
          %648 = sbr.rel (%p646) target = $region76
        $region75: #{tpu_custom_call.1} parent=71 // pred_region
          %s649 = sand.u32 %s187, 1
          %s650 = scalar_lea.sflag [#allocation4], %s649
          %s651 = sand.u32 %s187, 1
          %s652 = smul.addr %s651, 8
          %s653 = scalar_lea.vmem [#allocation10], %s652
          %654 = dma.done %s650, 128
        $region76: #{tpu_custom_call.1} parent=71 // pred_fallthru
          _
      $region72: #{tpu_custom_call.1} parent=5 // pred_fallthru
        _
    $region6: #{tpu_custom_call.1} parent=1 // loop_footer
      %s25 = sadd.s32 1, %s21
    $region7: #{tpu_custom_call.1} parent=1 // loop_footer_branch
      %20 = sbr.rel target = $region3
    $region8: #{tpu_custom_call.1} parent=1 // loop_exit
      _
    %655 = vsyncpa [#allocation3], 1
    %s656 = scalar_lea.sflag [#allocation3], 1
    %657 = vsyncpa %s656, 1
    %658 = vsyncpa [#allocation6], 1
    %659 = vsyncpa [#allocation9], 1
    %660 = vsyncpa [#allocation4], 1
    %s661 = scalar_lea.sflag [#allocation4], 1
    %662 = vsyncpa %s661, 1

</llo_original>
